<compile_context>
chip_gen: v5e
topology: v5e:2x2
jax: 0.10.0
libtpu: 0.0.40
codegen_flags: <defaults>
</compile_context>

<pallas_src>
import functools

import jax
import jax.numpy as jnp
from jax.experimental import pallas as pl
from jax.experimental.pallas import tpu as pltpu

EPS = 1e-9
TEMP = 0.66
IMG_DIM = 2048       # fixed by the module (nn.Linear(num_hidden, 2048))
LOSS_LANES = 128     # lane-dense partial-loss width


def decoder_a_kernel(lat_ref, w1_ref, b1_ref, w2_ref, b2eps_ref, img_ref,
                     pred_ref, loss_ref, *, chunk, trans_dtype):
    # dec_hidden: Linear + ReLU (bf16 MXU inputs, f32 accumulation).
    lat = lat_ref[...].astype(jnp.bfloat16)
    h = jnp.dot(lat, w1_ref[...], preferred_element_type=jnp.float32)
    h = jnp.maximum(h + b1_ref[...], 0.0).astype(jnp.bfloat16)

    bm = pred_ref.shape[0]
    out_w = pred_ref.shape[-1]
    acc = jnp.zeros((bm, LOSS_LANES), jnp.float32)

    # Chunk the 2048-wide tail so per-chunk intermediates stay in vregs
    # (static, tile-aligned slices -> no XLU, no VMEM temps the size of the
    # whole block).
    for c in range(out_w // chunk):
        lo = c * chunk
        hi = lo + chunk

        # dec_image chunk: Linear (+EPS already folded into the bias).
        x = jnp.dot(h, w2_ref[:, lo:hi],
                    preferred_element_type=jnp.float32) + b2eps_ref[:, lo:hi]

        # pred = logsigmoid(x) = min(x,0) - log1p(exp(-|x|)); pred <= 0 always.
        xt = x.astype(trans_dtype)
        s = jnp.exp(-jnp.abs(xt))                     # EUP 1
        lg = jnp.log1p(s)                             # EUP 2
        pred = jnp.minimum(x, 0.0) - lg.astype(jnp.float32)
        pred_ref[:, lo:hi] = pred.astype(pred_ref.dtype)   # bf16 writeback

        # BCEWithLogits(pred, t) with pred <= 0:
        #   = -pred*t + log1p(exp(pred)) = -pred*t + log1p(sigmoid(x))
        #   log1p(sigmoid(x)) = log1p(where(x>=0, 1+s, 2*s)) - log1p(s)
        lsig = jnp.log1p(jnp.where(xt >= 0, 1.0 + s, 2.0 * s)) - lg   # EUP 3
        bce = lsig.astype(jnp.float32) - pred * img_ref[:, lo:hi].astype(jnp.float32)

        # Fold this chunk into the 128-lane accumulator (pure VPU adds,
        # tile-aligned slices, no cross-lane XLU reduce).
        for g in range(chunk // LOSS_LANES):
            acc = acc + bce[:, g * LOSS_LANES:(g + 1) * LOSS_LANES]

    loss_ref[...] = acc   # unmasked 128-wide lane-dense store


def _choose_block_b(B, cap=1024):
    """Pick the batch tile: prefer >=4 (even) grid steps for pipelining and
    v7x megacore balance, then tiles >=256 rows (near HBM roofline), then any
    even / >=2-step split, tie-broken by larger tile."""
    best, best_key = None, None
    for c in range(16, min(B, cap) + 1, 16):
        if B % c:
            continue
        nb = B // c
        key = (
            1 if (nb >= 4 and nb % 2 == 0) else 0,
            1 if c >= 256 else 0,
            1 if (nb >= 2 and nb % 2 == 0) else 0,
            1 if nb >= 2 else 0,
            c,
        )
        if best_key is None or key > best_key:
            best_key, best = key, c
    return best if best is not None else B  # full-dim block is always legal


def _choose_chunk(block_b, out_w, max_elems=128 * 1024):
    """Largest tile-aligned chunk of the OUT axis such that one block_b x chunk
    f32 intermediate is <= ~512 KiB (keeps the elementwise tail in vregs)."""
    chunk = out_w
    while chunk > LOSS_LANES and chunk % 2 == 0 and block_b * chunk > max_elems:
        chunk //= 2
    if out_w % chunk or chunk % LOSS_LANES:
        return out_w   # fall back to unchunked if OUT isn't nicely divisible
    return chunk


def _default_trans_dtype():
    """bf16 EUP only where it pays (v7x is EUP-bound); f32 elsewhere — v5e has
    no bf16 VPU/EUP and it would just add casts."""
    try:
        kind = jax.devices()[0].device_kind.lower()
    except Exception:
        return jnp.float32
    if "v7" in kind:
        return jnp.bfloat16
    return jnp.float32


def _decoder_a_pallas(latents, w1, b1, w2, b2, images, *, block_b=None,
                      pred_dtype=jnp.bfloat16, trans_dtype=None):
    B, Din = latents.shape
    H = w1.shape[1]
    OUT = w2.shape[1]
    assert OUT % LOSS_LANES == 0, "output width must be a multiple of 128"

    if block_b is None:
        block_b = _choose_block_b(B)
    assert B % block_b == 0, "block_b must divide B (no remainder handling)"
    nb = B // block_b
    chunk = _choose_chunk(block_b, OUT)
    if trans_dtype is None:
        trans_dtype = _default_trans_dtype()

    # bf16 weights for the MXU (also halves the resident W2 buffer); fuse +EPS.
    w1_b = w1.astype(jnp.bfloat16)
    w2_b = w2.astype(jnp.bfloat16)
    b1_r = b1.reshape(1, H).astype(jnp.float32)
    b2eps = (b2 + EPS).reshape(1, OUT).astype(jnp.float32)

    # VMEM budget: double-buffered streaming tiles + (double-buffered) resident
    # weights + chunked elementwise intermediates, 1.5x headroom, clamped to
    # ~75% of physical VMEM (48 MiB fallback -> safe on v7x's 64 MiB).
    lat_bytes = jnp.dtype(latents.dtype).itemsize
    img_bytes = jnp.dtype(images.dtype).itemsize
    pred_bytes = jnp.dtype(pred_dtype).itemsize
    stream_bytes = block_b * (Din * lat_bytes + OUT * img_bytes
                              + OUT * pred_bytes + LOSS_LANES * 4)
    weight_bytes = Din * H * 2 + H * 4 + H * OUT * 2 + OUT * 4
    inter_bytes = block_b * (H * 6 + LOSS_LANES * 4) + 8 * block_b * chunk * 4
    vmem_limit = int(1.5 * (2 * stream_bytes + 2 * weight_bytes + inter_bytes))
    vmem_limit = max(vmem_limit, 16 << 20)
    try:
        hard_cap = int(0.75 * pltpu.get_tpu_info().vmem_capacity_bytes)
    except Exception:
        hard_cap = 48 << 20
    vmem_limit = min(vmem_limit, hard_cap)

    kernel = functools.partial(decoder_a_kernel, chunk=chunk,
                               trans_dtype=trans_dtype)

    pred, loss_part = pl.pallas_call(
        kernel,
        out_shape=(jax.ShapeDtypeStruct((B, OUT), pred_dtype),
                   jax.ShapeDtypeStruct((B, LOSS_LANES), jnp.float32)),
        grid_spec=pltpu.PrefetchScalarGridSpec(
            num_scalar_prefetch=0,
            grid=(nb,),
            in_specs=[
                pl.BlockSpec((block_b, Din), lambda i: (i, 0)),   # latents tile
                pl.BlockSpec((Din, H), lambda i: (0, 0)),         # W1 (resident, bf16)
                pl.BlockSpec((1, H), lambda i: (0, 0)),           # b1
                pl.BlockSpec((H, OUT), lambda i: (0, 0)),         # W2 (resident, bf16)
                pl.BlockSpec((1, OUT), lambda i: (0, 0)),         # b2 + EPS
                pl.BlockSpec((block_b, OUT), lambda i: (i, 0)),   # images tile
            ],
            out_specs=[
                pl.BlockSpec((block_b, OUT), lambda i: (i, 0)),          # pred (bf16)
                pl.BlockSpec((block_b, LOSS_LANES), lambda i: (i, 0)),   # loss partials
            ],
        ),
        compiler_params=pltpu.CompilerParams(
            dimension_semantics=("parallel",),
            vmem_limit_bytes=vmem_limit),
    )(latents, w1_b, b1_r, w2_b, b2eps, images)

    loss = jnp.sum(loss_part, axis=1)   # trivial 128-wide finish in the wrapper
    return pred, loss


def decoder_a_forward(params, zPrivate, zShared_attrs, images, shared_from, *,
                      block_b=None, pred_dtype=jnp.bfloat16, trans_dtype=None):
    """One iteration of the `for shared_from in shared.keys()` loop."""
    w1, b1, w2, b2 = params
    # 'poe' branch: torch.pow(zShared + EPS, 1/3); otherwise pass-through.
    if 'poe' in shared_from:
        shared = [jnp.power(z + EPS, 1.0 / 3.0) for z in zShared_attrs]
    else:
        shared = list(zShared_attrs)
    latents = jnp.concatenate([zPrivate] + shared, axis=-1)
    # pred_imgs.squeeze(0): leading sample dim is 1; squeeze before the linears.
    if latents.ndim == 3:
        latents = latents[0]
    return _decoder_a_pallas(latents, w1, b1, w2, b2, images,
                             block_b=block_b, pred_dtype=pred_dtype,
                             trans_dtype=trans_dtype)


def init_decoder_a(seed, zPrivate_dim, zSharedAttr_dim, num_hidden):
    """kaiming_init: kaiming_normal_ (std = sqrt(2/fan_in)) weights, zero biases."""
    Din = zPrivate_dim + 2 * sum(zSharedAttr_dim)
    key = jax.random.PRNGKey(seed)
    k1, k2 = jax.random.split(key)
    w1 = jax.random.normal(k1, (Din, num_hidden), jnp.float32) * jnp.sqrt(2.0 / Din)
    b1 = jnp.zeros((num_hidden,), jnp.float32)
    w2 = jax.random.normal(k2, (num_hidden, IMG_DIM), jnp.float32) * jnp.sqrt(2.0 / num_hidden)
    b2 = jnp.zeros((IMG_DIM,), jnp.float32)
    return (w1, b1, w2, b2)


def _reference(params, zPrivate, zShared_attrs, images, shared_from):
    w1, b1, w2, b2 = params
    if 'poe' in shared_from:
        shared = [jnp.power(z + EPS, 1.0 / 3.0) for z in zShared_attrs]
    else:
        shared = list(zShared_attrs)
    lat = jnp.concatenate([zPrivate] + shared, axis=-1)[0]
    h = jnp.maximum(lat @ w1 + b1, 0.0)
    x = h @ w2 + b2 + EPS
    pred = jnp.minimum(x, 0.0) - jnp.log1p(jnp.exp(-jnp.abs(x)))
    bce = jnp.maximum(pred, 0.0) - pred * images + jnp.log1p(jnp.exp(-jnp.abs(pred)))
    return pred, jnp.sum(bce, axis=1)


if __name__ == "__main__":
    seed = 0
    zPrivate_dim = 16
    zSharedAttr_dim = [2, 3, 3]          # per-attribute cardinalities
    num_hidden = 32
    B = 32                               # -> block_b=16, grid=(2,)

    params = init_decoder_a(seed, zPrivate_dim, zSharedAttr_dim, num_hidden)

    key = jax.random.PRNGKey(0)
    k_priv, k_img, *k_attrs = jax.random.split(key, 2 + len(zSharedAttr_dim))

    # q['privateA'] sample: [num_samples=1, B, zPrivate_dim]
    zPrivate = jax.random.normal(k_priv, (1, B, zPrivate_dim), jnp.float32)
    # q[shared_name] concrete samples (relaxed one-hot at TEMP), dim 2*attr_dim each
    zShared_attrs = []
    for k, d in zip(k_attrs, zSharedAttr_dim):
        logits = jax.random.normal(k, (1, B, 2 * d), jnp.float32)
        zShared_attrs.append(jax.nn.softmax(logits / TEMP, axis=-1))
    # target images (flattened), values in [0, 1]
    images = jax.random.uniform(k_img, (B, IMG_DIM), jnp.float32)

    ok = True
    for shared_from in ("own", "poe"):   # mirrors `for shared_from in shared.keys()`
        pred, loss = decoder_a_forward(params, zPrivate, zShared_attrs, images,
                                       shared_from)
        pred = jax.block_until_ready(pred)
        loss = jax.block_until_ready(loss)
        pred_ref, loss_ref = _reference(params, zPrivate, zShared_attrs, images,
                                        shared_from)
        ok &= bool(jnp.allclose(pred.astype(jnp.float32), pred_ref,
                                rtol=2e-2, atol=2e-2))
        ok &= bool(jnp.allclose(loss, loss_ref, rtol=2e-2, atol=2e-2))

    if ok:
        print("KERNEL_OK")
    else:
        print("MISMATCH")
</pallas_src>

<mosaic_0001>
module attributes {stable_mosaic.version = 11 : i64} {
  func.func @decoder_a_kernel(%arg0: i32, %arg1: memref<16x32xf32, #tpu.memory_space<vmem>>, %arg2: memref<32x32xbf16, #tpu.memory_space<vmem>>, %arg3: memref<1x32xf32, #tpu.memory_space<vmem>>, %arg4: memref<32x2048xbf16, #tpu.memory_space<vmem>>, %arg5: memref<1x2048xf32, #tpu.memory_space<vmem>>, %arg6: memref<16x2048xf32, #tpu.memory_space<vmem>>, %arg7: memref<16x2048xbf16, #tpu.memory_space<vmem>>, %arg8: memref<16x128xf32, #tpu.memory_space<vmem>>) attributes {dimension_semantics = [#tpu.dimension_semantics<parallel>], iteration_bounds = array<i64: 2>, scalar_prefetch = 0 : i64, scratch_operands = 0 : i64, tpu.core_type = #tpu.core_type<tc>, window_params = [{transform_indices = @transform_0, window_bounds = array<i64: 16, 32>}, {pipeline_mode = #tpu.pipeline_mode<synchronous>, transform_indices = @transform_1, window_bounds = array<i64: 32, 32>}, {pipeline_mode = #tpu.pipeline_mode<synchronous>, transform_indices = @transform_2, window_bounds = array<i64: 1, 32>}, {pipeline_mode = #tpu.pipeline_mode<synchronous>, transform_indices = @transform_3, window_bounds = array<i64: 32, 2048>}, {pipeline_mode = #tpu.pipeline_mode<synchronous>, transform_indices = @transform_4, window_bounds = array<i64: 1, 2048>}, {transform_indices = @transform_5, window_bounds = array<i64: 16, 2048>}, {transform_indices = @transform_6, window_bounds = array<i64: 16, 2048>}, {transform_indices = @transform_7, window_bounds = array<i64: 16, 128>}]} {
    %c0 = arith.constant 0 : index
    %c0_0 = arith.constant 0 : index
    %0 = vector.load %arg1[%c0, %c0_0] : memref<16x32xf32, #tpu.memory_space<vmem>>, vector<16x32xf32>
    %1 = arith.truncf %0 : vector<16x32xf32> to vector<16x32xbf16>
    %c0_1 = arith.constant 0 : index
    %c0_2 = arith.constant 0 : index
    %2 = vector.load %arg2[%c0_1, %c0_2] : memref<32x32xbf16, #tpu.memory_space<vmem>>, vector<32x32xbf16>
    %cst = arith.constant dense<0.000000e+00> : vector<16x32xf32>
    %3 = tpu.matmul %1, %2, %cst {dimension_numbers = #tpu.dot_dimension_numbers<[1], [0], [0], [1], [0, 0, 1, 1], [], []>} : vector<16x32xbf16>, vector<32x32xbf16>, vector<16x32xf32> -> vector<16x32xf32>
    %c0_3 = arith.constant 0 : index
    %c0_4 = arith.constant 0 : index
    %4 = vector.load %arg3[%c0_3, %c0_4] : memref<1x32xf32, #tpu.memory_space<vmem>>, vector<1x32xf32>
    %5 = vector.broadcast %4 : vector<1x32xf32> to vector<16x32xf32>
    %6 = arith.addf %3, %5 : vector<16x32xf32>
    %cst_5 = arith.constant 0.000000e+00 : f32
    %7 = vector.broadcast %cst_5 : f32 to vector<16x32xf32>
    %8 = arith.maximumf %6, %7 : vector<16x32xf32>
    %9 = arith.truncf %8 : vector<16x32xf32> to vector<16x32xbf16>
    %cst_6 = arith.constant 0.000000e+00 : f32
    %10 = vector.broadcast %cst_6 : f32 to vector<16x128xf32>
    %c0_7 = arith.constant 0 : index
    %c0_8 = arith.constant 0 : index
    %11 = vector.load %arg4[%c0_7, %c0_8] : memref<32x2048xbf16, #tpu.memory_space<vmem>>, vector<32x2048xbf16>
    %cst_9 = arith.constant dense<0.000000e+00> : vector<16x2048xf32>
    %12 = tpu.matmul %9, %11, %cst_9 {dimension_numbers = #tpu.dot_dimension_numbers<[1], [0], [0], [1], [0, 0, 1, 1], [], []>} : vector<16x32xbf16>, vector<32x2048xbf16>, vector<16x2048xf32> -> vector<16x2048xf32>
    %c0_10 = arith.constant 0 : index
    %c0_11 = arith.constant 0 : index
    %13 = vector.load %arg5[%c0_10, %c0_11] : memref<1x2048xf32, #tpu.memory_space<vmem>>, vector<1x2048xf32>
    %14 = vector.broadcast %13 : vector<1x2048xf32> to vector<16x2048xf32>
    %15 = arith.addf %12, %14 : vector<16x2048xf32>
    %16 = math.absf %15 : vector<16x2048xf32>
    %cst_12 = arith.constant 0.000000e+00 : f32
    %17 = vector.broadcast %cst_12 : f32 to vector<16x2048xf32>
    %18 = arith.subf %17, %16 : vector<16x2048xf32>
    %19 = math.exp %18 : vector<16x2048xf32>
    %20 = math.log1p %19 : vector<16x2048xf32>
    %cst_13 = arith.constant 0.000000e+00 : f32
    %21 = vector.broadcast %cst_13 : f32 to vector<16x2048xf32>
    %22 = arith.minimumf %15, %21 : vector<16x2048xf32>
    %23 = arith.subf %22, %20 : vector<16x2048xf32>
    %24 = arith.truncf %23 : vector<16x2048xf32> to vector<16x2048xbf16>
    %c0_14 = arith.constant 0 : index
    %c0_15 = arith.constant 0 : index
    %25 = vector.load %arg7[%c0_14, %c0_15] : memref<16x2048xbf16, #tpu.memory_space<vmem>>, vector<16x2048xbf16>
    tpu.vector_store %arg7[%c0_14, %c0_15], %24 {strides = array<i32>} : memref<16x2048xbf16, #tpu.memory_space<vmem>>, vector<16x2048xbf16>,
    %cst_16 = arith.constant 0.000000e+00 : f32
    %26 = vector.broadcast %cst_16 : f32 to vector<16x2048xf32>
    %27 = arith.cmpf oge, %15, %26 : vector<16x2048xf32>
    %cst_17 = arith.constant 1.000000e+00 : f32
    %28 = vector.broadcast %cst_17 : f32 to vector<16x2048xf32>
    %29 = arith.addf %28, %19 : vector<16x2048xf32>
    %cst_18 = arith.constant 2.000000e+00 : f32
    %30 = vector.broadcast %cst_18 : f32 to vector<16x2048xf32>
    %31 = arith.mulf %30, %19 : vector<16x2048xf32>
    %32 = arith.select %27, %29, %31 : vector<16x2048xi1>, vector<16x2048xf32>
    %33 = math.log1p %32 : vector<16x2048xf32>
    %34 = arith.subf %33, %20 : vector<16x2048xf32>
    %c0_19 = arith.constant 0 : index
    %c0_20 = arith.constant 0 : index
    %35 = vector.load %arg6[%c0_19, %c0_20] : memref<16x2048xf32, #tpu.memory_space<vmem>>, vector<16x2048xf32>
    %36 = arith.mulf %23, %35 : vector<16x2048xf32>
    %37 = arith.subf %34, %36 : vector<16x2048xf32>
    %38 = vector.extract_strided_slice %37 {offsets = [0, 0], sizes = [16, 128], strides = [1, 1]} : vector<16x2048xf32> to vector<16x128xf32>
    %39 = arith.addf %10, %38 : vector<16x128xf32>
    %40 = vector.extract_strided_slice %37 {offsets = [0, 128], sizes = [16, 128], strides = [1, 1]} : vector<16x2048xf32> to vector<16x128xf32>
    %41 = arith.addf %39, %40 : vector<16x128xf32>
    %42 = vector.extract_strided_slice %37 {offsets = [0, 256], sizes = [16, 128], strides = [1, 1]} : vector<16x2048xf32> to vector<16x128xf32>
    %43 = arith.addf %41, %42 : vector<16x128xf32>
    %44 = vector.extract_strided_slice %37 {offsets = [0, 384], sizes = [16, 128], strides = [1, 1]} : vector<16x2048xf32> to vector<16x128xf32>
    %45 = arith.addf %43, %44 : vector<16x128xf32>
    %46 = vector.extract_strided_slice %37 {offsets = [0, 512], sizes = [16, 128], strides = [1, 1]} : vector<16x2048xf32> to vector<16x128xf32>
    %47 = arith.addf %45, %46 : vector<16x128xf32>
    %48 = vector.extract_strided_slice %37 {offsets = [0, 640], sizes = [16, 128], strides = [1, 1]} : vector<16x2048xf32> to vector<16x128xf32>
    %49 = arith.addf %47, %48 : vector<16x128xf32>
    %50 = vector.extract_strided_slice %37 {offsets = [0, 768], sizes = [16, 128], strides = [1, 1]} : vector<16x2048xf32> to vector<16x128xf32>
    %51 = arith.addf %49, %50 : vector<16x128xf32>
    %52 = vector.extract_strided_slice %37 {offsets = [0, 896], sizes = [16, 128], strides = [1, 1]} : vector<16x2048xf32> to vector<16x128xf32>
    %53 = arith.addf %51, %52 : vector<16x128xf32>
    %54 = vector.extract_strided_slice %37 {offsets = [0, 1024], sizes = [16, 128], strides = [1, 1]} : vector<16x2048xf32> to vector<16x128xf32>
    %55 = arith.addf %53, %54 : vector<16x128xf32>
    %56 = vector.extract_strided_slice %37 {offsets = [0, 1152], sizes = [16, 128], strides = [1, 1]} : vector<16x2048xf32> to vector<16x128xf32>
    %57 = arith.addf %55, %56 : vector<16x128xf32>
    %58 = vector.extract_strided_slice %37 {offsets = [0, 1280], sizes = [16, 128], strides = [1, 1]} : vector<16x2048xf32> to vector<16x128xf32>
    %59 = arith.addf %57, %58 : vector<16x128xf32>
    %60 = vector.extract_strided_slice %37 {offsets = [0, 1408], sizes = [16, 128], strides = [1, 1]} : vector<16x2048xf32> to vector<16x128xf32>
    %61 = arith.addf %59, %60 : vector<16x128xf32>
    %62 = vector.extract_strided_slice %37 {offsets = [0, 1536], sizes = [16, 128], strides = [1, 1]} : vector<16x2048xf32> to vector<16x128xf32>
    %63 = arith.addf %61, %62 : vector<16x128xf32>
    %64 = vector.extract_strided_slice %37 {offsets = [0, 1664], sizes = [16, 128], strides = [1, 1]} : vector<16x2048xf32> to vector<16x128xf32>
    %65 = arith.addf %63, %64 : vector<16x128xf32>
    %66 = vector.extract_strided_slice %37 {offsets = [0, 1792], sizes = [16, 128], strides = [1, 1]} : vector<16x2048xf32> to vector<16x128xf32>
    %67 = arith.addf %65, %66 : vector<16x128xf32>
    %68 = vector.extract_strided_slice %37 {offsets = [0, 1920], sizes = [16, 128], strides = [1, 1]} : vector<16x2048xf32> to vector<16x128xf32>
    %69 = arith.addf %67, %68 : vector<16x128xf32>
    %c0_21 = arith.constant 0 : index
    %c0_22 = arith.constant 0 : index
    %70 = vector.load %arg8[%c0_21, %c0_22] : memref<16x128xf32, #tpu.memory_space<vmem>>, vector<16x128xf32>
    tpu.vector_store %arg8[%c0_21, %c0_22], %69 {strides = array<i32>} : memref<16x128xf32, #tpu.memory_space<vmem>>, vector<16x128xf32>,
    return
  }
  func.func @transform_0(%arg0: i32) -> (i32, i32) {
    %c0_i32 = arith.constant 0 : i32
    %c0_i32_0 = arith.constant 0 : i32
    return %arg0, %c0_i32 : i32, i32
  }
  func.func @transform_1(%arg0: i32) -> (i32, i32) {
    %c0_i32 = arith.constant 0 : i32
    %c0_i32_0 = arith.constant 0 : i32
    %c0_i32_1 = arith.constant 0 : i32
    return %c0_i32, %c0_i32_0 : i32, i32
  }
  func.func @transform_2(%arg0: i32) -> (i32, i32) {
    %c0_i32 = arith.constant 0 : i32
    %c0_i32_0 = arith.constant 0 : i32
    %c0_i32_1 = arith.constant 0 : i32
    return %c0_i32, %c0_i32_0 : i32, i32
  }
  func.func @transform_3(%arg0: i32) -> (i32, i32) {
    %c0_i32 = arith.constant 0 : i32
    %c0_i32_0 = arith.constant 0 : i32
    %c0_i32_1 = arith.constant 0 : i32
    return %c0_i32, %c0_i32_0 : i32, i32
  }
  func.func @transform_4(%arg0: i32) -> (i32, i32) {
    %c0_i32 = arith.constant 0 : i32
    %c0_i32_0 = arith.constant 0 : i32
    %c0_i32_1 = arith.constant 0 : i32
    return %c0_i32, %c0_i32_0 : i32, i32
  }
  func.func @transform_5(%arg0: i32) -> (i32, i32) {
    %c0_i32 = arith.constant 0 : i32
    %c0_i32_0 = arith.constant 0 : i32
    return %arg0, %c0_i32 : i32, i32
  }
  func.func @transform_6(%arg0: i32) -> (i32, i32) {
    %c0_i32 = arith.constant 0 : i32
    %c0_i32_0 = arith.constant 0 : i32
    return %arg0, %c0_i32 : i32, i32
  }
  func.func @transform_7(%arg0: i32) -> (i32, i32) {
    %c0_i32 = arith.constant 0 : i32
    %c0_i32_0 = arith.constant 0 : i32
    return %arg0, %c0_i32 : i32, i32
  }
}

</mosaic_0001>

<llo_original>
// kernel: tpu_custom_call.1
$region0: #{tpu_custom_call.1}
  #allocation0 [shape = 'u32[]', space=smem, size = 0x4, offset = 0x4, fixed_abs, tag = 'smem constant byte address 0x4 - core index']
  #allocation1 [shape = 'u32[72,128]{1,0:T(1,128)}', space=vmem, size = 0x9000, scoped, tag = 'internal scratch']
  %s0 = inlined_call_operand.hbm [shape: f32[32,32], index: 0, kind: input, shape index: {}]
  %s1 = inlined_call_operand.hbm [shape: bf16[32,32], index: 1, kind: input, shape index: {}]
  %s2 = inlined_call_operand.vmem [shape: f32[1,32], index: 2, kind: input, shape index: {}]
  %s3 = inlined_call_operand.hbm [shape: bf16[32,2048], index: 3, kind: input, shape index: {}]
  %s4 = inlined_call_operand.hbm [shape: f32[1,2048], index: 4, kind: input, shape index: {}]
  %s5 = inlined_call_operand.hbm [shape: f32[32,2048], index: 5, kind: input, shape index: {}]
  %s6 = inlined_call_operand.hbm [shape: bf16[32,2048], index: 6, kind: output, shape index: {0}]
  %s7 = inlined_call_operand.hbm [shape: f32[32,128], index: 7, kind: output, shape index: {1}]
  %8 = xla_tuple %s6, %s7
  %s9 = sld [smem:[#allocation0]]
  $region85: #{tpu_custom_call.1} parent=0
    _
  %s11 = ssub.s32 1, %s9
  %s12 = scalar_select 0, %s11, %s9
  $region1: #{tpu_custom_call.1} parent=0
    #allocation2 [shape = 'u8[16384]{0}', space=vmem, size = 0x4000, scoped, tag = 'input window, operand 0']
    #allocation3 [shape = 's32[2]{0}', space=sflag, size = 0x8, scoped, tag = 'scoped memory for tpu_custom_call.1']
    #allocation4 [shape = 's32[2]{0}', space=sflag, size = 0x8, scoped, tag = 'scoped memory for tpu_custom_call.1']
    #allocation5 [shape = 'u8[8192]{0}', space=vmem, size = 0x2000, scoped, tag = 'input window, operand 1, single buffered']
    #allocation6 [shape = 's32[1]{0}', space=sflag, size = 0x4, scoped, tag = 'scoped memory for tpu_custom_call.1']
    #allocation7 [shape = 'u8[131072]{0}', space=vmem, size = 0x20000, scoped, tag = 'input window, operand 3, single buffered']
    #allocation8 [shape = 'u8[8192]{0}', space=vmem, size = 0x2000, scoped, tag = 'input window, operand 4, single buffered']
    #allocation9 [shape = 's32[1]{0}', space=sflag, size = 0x4, scoped, tag = 'scoped memory for tpu_custom_call.1']
    #allocation10 [shape = 'u8[262144]{0}', space=vmem, size = 0x40000, scoped, tag = 'input window, operand 5']
    #allocation11 [shape = 'u8[131072]{0}', space=vmem, size = 0x20000, scoped, tag = 'output window, operand 0']
    #allocation12 [shape = 'u8[16384]{0}', space=vmem, size = 0x4000, scoped, tag = 'output window, operand 1']
    #allocation13 [shape = 's32[2]{0}', space=sflag, size = 0x8, scoped, tag = 'scoped memory for tpu_custom_call.1']
    %13 = vsyncpa [#allocation3], 0
    %s14 = scalar_lea.sflag [#allocation3], 1
    %15 = vsyncpa %s14, 0
    %16 = vsyncpa [#allocation6], 0
    %17 = vsyncpa [#allocation9], 0
    %18 = vsyncpa [#allocation4], 0
    %s19 = scalar_lea.sflag [#allocation4], 1
    %20 = vsyncpa %s19, 0
    %21 = vsyncpa [#allocation13], 0
    %s22 = scalar_lea.sflag [#allocation13], 1
    %23 = vsyncpa %s22, 0
    loop: start=0, step=1, limit=4
    $region2: #{tpu_custom_call.1} parent=1 // loop_pre_header
      _
    $region3: #{tpu_custom_call.1} parent=1 // loop_header
      %s25 = sphi 0, %s29
      %p26 = scmp.ge.s32.totalorder %s25, 4
      %s35 = sphi 0, %s37
      %s38 = sphi 0, %s35
      %s39 = sphi 0, %s38
      %s55 = sphi 0, %s39
      %s59 = sphi 0, %s59
      %s61 = sphi 0, %s59
      %s62 = sphi 0, %s61
      %s76 = sphi 0, %s62
      %s80 = sphi 0, %s80
      %s82 = sphi 0, %s80
      %s83 = sphi 0, %s82
      %s97 = sphi 0, %s83
      %s101 = sphi 0, %s101
      %s103 = sphi 0, %s101
      %s104 = sphi 0, %s103
      %s118 = sphi 0, %s104
      %s122 = sphi 0, %s122
      %s124 = sphi 0, %s122
      %s125 = sphi 0, %s124
      %s139 = sphi 0, %s125
      %s145 = sphi 0, %s147
      %s148 = sphi 0, %s145
      %s149 = sphi 0, %s148
      %s165 = sphi 0, %s149
      %s171 = sphi 0, %s173
      %s174 = sphi 0, %s171
      %s175 = sphi 0, %s174
      %s191 = sphi 0, %s175
      %s197 = sphi 0, %s199
      %s200 = sphi 0, %s197
      %s201 = sphi 0, %s200
      %s217 = sphi 0, %s201
    $region4: #{tpu_custom_call.1} parent=1 // loop_header_branch
      %28 = sbr.rel (%p26) target = $region8
    $region5: #{tpu_custom_call.1} parent=1 // loop_body
      %s30 = ssub.s32 %s25, 1
      %s31 = ssub.s32 %s25, 2
      %s32 = sadd.s32 %s25, 1
      %s33 = ssub.s32 %s25, %s32
      %p34 = scmp.eq.s32.totalorder %s33, 0
      %s36 = sadd.s32 %s35, 1
      %s37 = scalar_select %p34, %s35, %s36
      %p40 = pneg %p34
      %p41 = scmp.eq.s32.totalorder %s25, 1
      %p42 = por %p40, %p41
      %p43 = scmp.ne.s32.totalorder %s35, %s38
      %p44 = scmp.eq.s32.totalorder %s25, 0
      %p45 = por %p43, %p44
      %p46 = scmp.ne.s32.totalorder %s35, %s38
      %p47 = scmp.eq.s32.totalorder %s30, 1
      %p48 = por %p46, %p47
      %p49 = scmp.ne.s32.totalorder %s38, %s39
      %p50 = scmp.eq.s32.totalorder %s30, 0
      %p51 = por %p49, %p50
      %p52 = scmp.ne.s32.totalorder %s38, %s39
      %p53 = scmp.eq.s32.totalorder %s31, 1
      %p54 = por %p52, %p53
      %p56 = scmp.ne.s32.totalorder %s39, %s55
      %p57 = scmp.eq.s32.totalorder %s31, 0
      %p58 = por %p56, %p57
      %s60 = sadd.s32 %s59, 1
      %p63 = scmp.eq.s32.totalorder %s25, 1
      %p64 = scmp.ne.s32.totalorder %s59, %s61
      %p65 = scmp.eq.s32.totalorder %s25, 0
      %p66 = por %p64, %p65
      %p67 = scmp.ne.s32.totalorder %s59, %s61
      %p68 = scmp.eq.s32.totalorder %s30, 1
      %p69 = por %p67, %p68
      %p70 = scmp.ne.s32.totalorder %s61, %s62
      %p71 = scmp.eq.s32.totalorder %s30, 0
      %p72 = por %p70, %p71
      %p73 = scmp.ne.s32.totalorder %s61, %s62
      %p74 = scmp.eq.s32.totalorder %s31, 1
      %p75 = por %p73, %p74
      %p77 = scmp.ne.s32.totalorder %s62, %s76
      %p78 = scmp.eq.s32.totalorder %s31, 0
      %p79 = por %p77, %p78
      %s81 = sadd.s32 %s80, 1
      %p84 = scmp.eq.s32.totalorder %s25, 1
      %p85 = scmp.ne.s32.totalorder %s80, %s82
      %p86 = scmp.eq.s32.totalorder %s25, 0
      %p87 = por %p85, %p86
      %p88 = scmp.ne.s32.totalorder %s80, %s82
      %p89 = scmp.eq.s32.totalorder %s30, 1
      %p90 = por %p88, %p89
      %p91 = scmp.ne.s32.totalorder %s82, %s83
      %p92 = scmp.eq.s32.totalorder %s30, 0
      %p93 = por %p91, %p92
      %p94 = scmp.ne.s32.totalorder %s82, %s83
      %p95 = scmp.eq.s32.totalorder %s31, 1
      %p96 = por %p94, %p95
      %p98 = scmp.ne.s32.totalorder %s83, %s97
      %p99 = scmp.eq.s32.totalorder %s31, 0
      %p100 = por %p98, %p99
      %s102 = sadd.s32 %s101, 1
      %p105 = scmp.eq.s32.totalorder %s25, 1
      %p106 = scmp.ne.s32.totalorder %s101, %s103
      %p107 = scmp.eq.s32.totalorder %s25, 0
      %p108 = por %p106, %p107
      %p109 = scmp.ne.s32.totalorder %s101, %s103
      %p110 = scmp.eq.s32.totalorder %s30, 1
      %p111 = por %p109, %p110
      %p112 = scmp.ne.s32.totalorder %s103, %s104
      %p113 = scmp.eq.s32.totalorder %s30, 0
      %p114 = por %p112, %p113
      %p115 = scmp.ne.s32.totalorder %s103, %s104
      %p116 = scmp.eq.s32.totalorder %s31, 1
      %p117 = por %p115, %p116
      %p119 = scmp.ne.s32.totalorder %s104, %s118
      %p120 = scmp.eq.s32.totalorder %s31, 0
      %p121 = por %p119, %p120
      %s123 = sadd.s32 %s122, 1
      %p126 = scmp.eq.s32.totalorder %s25, 1
      %p127 = scmp.ne.s32.totalorder %s122, %s124
      %p128 = scmp.eq.s32.totalorder %s25, 0
      %p129 = por %p127, %p128
      %p130 = scmp.ne.s32.totalorder %s122, %s124
      %p131 = scmp.eq.s32.totalorder %s30, 1
      %p132 = por %p130, %p131
      %p133 = scmp.ne.s32.totalorder %s124, %s125
      %p134 = scmp.eq.s32.totalorder %s30, 0
      %p135 = por %p133, %p134
      %p136 = scmp.ne.s32.totalorder %s124, %s125
      %p137 = scmp.eq.s32.totalorder %s31, 1
      %p138 = por %p136, %p137
      %p140 = scmp.ne.s32.totalorder %s125, %s139
      %p141 = scmp.eq.s32.totalorder %s31, 0
      %p142 = por %p140, %p141
      %s143 = ssub.s32 %s25, %s32
      %p144 = scmp.eq.s32.totalorder %s143, 0
      %s146 = sadd.s32 %s145, 1
      %s147 = scalar_select %p144, %s145, %s146
      %p150 = pneg %p144
      %p151 = scmp.eq.s32.totalorder %s25, 1
      %p152 = por %p150, %p151
      %p153 = scmp.ne.s32.totalorder %s145, %s148
      %p154 = scmp.eq.s32.totalorder %s25, 0
      %p155 = por %p153, %p154
      %p156 = scmp.ne.s32.totalorder %s145, %s148
      %p157 = scmp.eq.s32.totalorder %s30, 1
      %p158 = por %p156, %p157
      %p159 = scmp.ne.s32.totalorder %s148, %s149
      %p160 = scmp.eq.s32.totalorder %s30, 0
      %p161 = por %p159, %p160
      %p162 = scmp.ne.s32.totalorder %s148, %s149
      %p163 = scmp.eq.s32.totalorder %s31, 1
      %p164 = por %p162, %p163
      %p166 = scmp.ne.s32.totalorder %s149, %s165
      %p167 = scmp.eq.s32.totalorder %s31, 0
      %p168 = por %p166, %p167
      %s169 = ssub.s32 %s25, %s32
      %p170 = scmp.eq.s32.totalorder %s169, 0
      %s172 = sadd.s32 %s171, 1
      %s173 = scalar_select %p170, %s171, %s172
      %p176 = pneg %p170
      %p177 = scmp.eq.s32.totalorder %s25, 1
      %p178 = por %p176, %p177
      %p179 = scmp.ne.s32.totalorder %s171, %s174
      %p180 = scmp.eq.s32.totalorder %s25, 0
      %p181 = por %p179, %p180
      %p182 = scmp.ne.s32.totalorder %s171, %s174
      %p183 = scmp.eq.s32.totalorder %s30, 1
      %p184 = por %p182, %p183
      %p185 = scmp.ne.s32.totalorder %s174, %s175
      %p186 = scmp.eq.s32.totalorder %s30, 0
      %p187 = por %p185, %p186
      %p188 = scmp.ne.s32.totalorder %s174, %s175
      %p189 = scmp.eq.s32.totalorder %s31, 1
      %p190 = por %p188, %p189
      %p192 = scmp.ne.s32.totalorder %s175, %s191
      %p193 = scmp.eq.s32.totalorder %s31, 0
      %p194 = por %p192, %p193
      %s195 = ssub.s32 %s25, %s32
      %p196 = scmp.eq.s32.totalorder %s195, 0
      %s198 = sadd.s32 %s197, 1
      %s199 = scalar_select %p196, %s197, %s198
      %p202 = pneg %p196
      %p203 = scmp.eq.s32.totalorder %s25, 1
      %p204 = por %p202, %p203
      %p205 = scmp.ne.s32.totalorder %s197, %s200
      %p206 = scmp.eq.s32.totalorder %s25, 0
      %p207 = por %p205, %p206
      %p208 = scmp.ne.s32.totalorder %s197, %s200
      %p209 = scmp.eq.s32.totalorder %s30, 1
      %p210 = por %p208, %p209
      %p211 = scmp.ne.s32.totalorder %s200, %s201
      %p212 = scmp.eq.s32.totalorder %s30, 0
      %p213 = por %p211, %p212
      %p214 = scmp.ne.s32.totalorder %s200, %s201
      %p215 = scmp.eq.s32.totalorder %s31, 1
      %p216 = por %p214, %p215
      %p218 = scmp.ne.s32.totalorder %s201, %s217
      %p219 = scmp.eq.s32.totalorder %s31, 0
      %p220 = por %p218, %p219
      %p221 = scmp.le.s32.totalorder 1, %s25
      %p222 = scmp.lt.s32.totalorder %s25, 3
      %p223 = pnand %p221, %p222
      %p224 = pneg %p223
      // Predicated region
      $region9: #{tpu_custom_call.1} parent=5 // pred_check
        _
      $region10: #{tpu_custom_call.1} parent=5 // pred_check_branch
        %226 = sbr.rel (%p223) target = $region12
      $region11: #{tpu_custom_call.1} parent=5 // pred_region
        %s227 = ssub.s32 %s25, 1
        // Predicated region
        $region13: #{tpu_custom_call.1} parent=11 // pred_check
          %p228 = pneg %p72
        $region14: #{tpu_custom_call.1} parent=11 // pred_check_branch
          %230 = sbr.rel (%p228) target = $region16
        $region15: #{tpu_custom_call.1} parent=11 // pred_region
          %232 = vsyncadd [#allocation6], 0
          %s233 = sshll.u32 %s1, 4
          %s234 = int_to_ptr.hbm [resolvable:$true] %s233
          %s235 = sshll.u32 [#allocation5], 4
          %s236 = int_to_ptr.vmem [resolvable:$true] %s235
          %241 = dma.hbm_to_vmem [thread:$0]  %s234, 256, %s236, [#allocation6], 64, 64, 4
        $region16: #{tpu_custom_call.1} parent=11 // pred_fallthru
          _
        // Predicated region
        $region17: #{tpu_custom_call.1} parent=11 // pred_check
          %p242 = pneg %p93
        $region18: #{tpu_custom_call.1} parent=11 // pred_check_branch
          %244 = sbr.rel (%p242) target = $region20
        $region19: #{tpu_custom_call.1} parent=11 // pred_region
          _
        $region20: #{tpu_custom_call.1} parent=11 // pred_fallthru
          _
        // Predicated region
        $region21: #{tpu_custom_call.1} parent=11 // pred_check
          %p245 = pneg %p114
        $region22: #{tpu_custom_call.1} parent=11 // pred_check_branch
          %247 = sbr.rel (%p245) target = $region24
        $region23: #{tpu_custom_call.1} parent=11 // pred_region
          %249 = vsyncadd [#allocation6], 0
          %s250 = sshll.u32 %s3, 4
          %s251 = int_to_ptr.hbm [resolvable:$true] %s250
          %s252 = sshll.u32 [#allocation7], 4
          %s253 = int_to_ptr.vmem [resolvable:$true] %s252
          %258 = dma.hbm_to_vmem [thread:$0]  %s251, 4096, %s253, [#allocation6], 1024, 1024, 64
        $region24: #{tpu_custom_call.1} parent=11 // pred_fallthru
          _
        // Predicated region
        $region25: #{tpu_custom_call.1} parent=11 // pred_check
          %p259 = pneg %p135
        $region26: #{tpu_custom_call.1} parent=11 // pred_check_branch
          %261 = sbr.rel (%p259) target = $region28
        $region27: #{tpu_custom_call.1} parent=11 // pred_region
          %263 = vsyncadd [#allocation9], 0
          %s265 = sshll.u32 %s4, 4
          %s266 = int_to_ptr.hbm [resolvable:$true] %s265
          %s267 = sshll.u32 [#allocation8], 4
          %s268 = int_to_ptr.vmem [resolvable:$true] %s267
          %270 = dma.hbm_to_vmem [thread:$0]  %s266, 256, %s268, [#allocation9]
        $region28: #{tpu_custom_call.1} parent=11 // pred_fallthru
          _
      $region12: #{tpu_custom_call.1} parent=5 // pred_fallthru
        _
      %p271 = scmp.lt.s32.totalorder %s25, 2
      // Predicated region
      $region29: #{tpu_custom_call.1} parent=5 // pred_check
        %p272 = pneg %p271
      $region30: #{tpu_custom_call.1} parent=5 // pred_check_branch
        %274 = sbr.rel (%p272) target = $region32
      $region31: #{tpu_custom_call.1} parent=5 // pred_region
        // Predicated region
        $region33: #{tpu_custom_call.1} parent=31 // pred_check
          %p275 = pneg %p45
        $region34: #{tpu_custom_call.1} parent=31 // pred_check_branch
          %277 = sbr.rel (%p275) target = $region36
        $region35: #{tpu_custom_call.1} parent=31 // pred_region
          %s278 = sand.u32 %s25, 1
          %s279 = scalar_lea.sflag [#allocation3], %s278
          %s280 = sand.u32 %s35, 1
          %s281 = smul.addr %s280, 16
          %s282 = scalar_lea.vmem [#allocation2], %s281
          %s283 = smul.u32 2, %s25
          %285 = vsyncadd %s279, 0
          %s286 = smul.addr %s283, 8
          %s287 = scalar_lea.hbm %s0, %s286
          %s288 = sshll.u32 %s287, 4
          %s289 = int_to_ptr.hbm [resolvable:$true] %s288
          %s290 = sshll.u32 %s282, 4
          %s291 = int_to_ptr.vmem [resolvable:$true] %s290
          %296 = dma.hbm_to_vmem [thread:$0]  %s289, 256, %s291, %s279, 128, 128, 8
        $region36: #{tpu_custom_call.1} parent=31 // pred_fallthru
          _
        // Predicated region
        $region37: #{tpu_custom_call.1} parent=31 // pred_check
          %p297 = pneg %p155
        $region38: #{tpu_custom_call.1} parent=31 // pred_check_branch
          %299 = sbr.rel (%p297) target = $region40
        $region39: #{tpu_custom_call.1} parent=31 // pred_region
          %s300 = sand.u32 %s25, 1
          %s301 = scalar_lea.sflag [#allocation3], %s300
          %s302 = sand.u32 %s145, 1
          %s303 = smul.addr %s302, 256
          %s304 = scalar_lea.vmem [#allocation10], %s303
          %s305 = smul.u32 2, %s25
          %307 = vsyncadd %s301, 0
          %s308 = smul.addr %s305, 16
          %s309 = smul.addr %s308, 8
          %s310 = scalar_lea.hbm %s5, %s309
          %s311 = sshll.u32 %s310, 4
          %s312 = int_to_ptr.hbm [resolvable:$true] %s311
          %s313 = sshll.u32 %s304, 4
          %s314 = int_to_ptr.vmem [resolvable:$true] %s313
          %319 = dma.hbm_to_vmem [thread:$0]  %s312, 4096, %s314, %s301, 2048, 2048, 128
        $region40: #{tpu_custom_call.1} parent=31 // pred_fallthru
          _
      $region32: #{tpu_custom_call.1} parent=5 // pred_fallthru
        _
      %p320 = scmp.le.s32.totalorder 1, %s25
      %p321 = scmp.lt.s32.totalorder %s25, 3
      %p322 = pnand %p320, %p321
      %p323 = pneg %p322
      // Predicated region
      $region41: #{tpu_custom_call.1} parent=5 // pred_check
        _
      $region42: #{tpu_custom_call.1} parent=5 // pred_check_branch
        %325 = sbr.rel (%p322) target = $region44
      $region43: #{tpu_custom_call.1} parent=5 // pred_region
        %s326 = ssub.s32 %s25, 1
        %s327 = sand.u32 %s30, 1
        %s328 = scalar_lea.sflag [#allocation3], %s327
        %s329 = sand.u32 %s38, 1
        %s330 = smul.addr %s329, 16
        %s331 = scalar_lea.vmem [#allocation2], %s330
        // Predicated region
        $region45: #{tpu_custom_call.1} parent=43 // pred_check
          %p332 = pneg %p51
        $region46: #{tpu_custom_call.1} parent=43 // pred_check_branch
          %334 = sbr.rel (%p332) target = $region48
        $region47: #{tpu_custom_call.1} parent=43 // pred_region
          %336 = dma.done %s328, 256
        $region48: #{tpu_custom_call.1} parent=43 // pred_fallthru
          _
        // Predicated region
        $region49: #{tpu_custom_call.1} parent=43 // pred_check
          %p337 = pneg %p72
        $region50: #{tpu_custom_call.1} parent=43 // pred_check_branch
          %339 = sbr.rel (%p337) target = $region52
        $region51: #{tpu_custom_call.1} parent=43 // pred_region
          %341 = dma.done [#allocation6], 256
        $region52: #{tpu_custom_call.1} parent=43 // pred_fallthru
          _
        // Predicated region
        $region53: #{tpu_custom_call.1} parent=43 // pred_check
          %p342 = pneg %p114
        $region54: #{tpu_custom_call.1} parent=43 // pred_check_branch
          %344 = sbr.rel (%p342) target = $region56
        $region55: #{tpu_custom_call.1} parent=43 // pred_region
          %346 = dma.done [#allocation6], 4096
        $region56: #{tpu_custom_call.1} parent=43 // pred_fallthru
          _
        // Predicated region
        $region57: #{tpu_custom_call.1} parent=43 // pred_check
          %p347 = pneg %p135
        $region58: #{tpu_custom_call.1} parent=43 // pred_check_branch
          %349 = sbr.rel (%p347) target = $region60
        $region59: #{tpu_custom_call.1} parent=43 // pred_region
          %351 = dma.done [#allocation9], 256
        $region60: #{tpu_custom_call.1} parent=43 // pred_fallthru
          _
        %s352 = sand.u32 %s30, 1
        %s353 = scalar_lea.sflag [#allocation3], %s352
        %s354 = sand.u32 %s148, 1
        %s355 = smul.addr %s354, 256
        %s356 = scalar_lea.vmem [#allocation10], %s355
        // Predicated region
        $region61: #{tpu_custom_call.1} parent=43 // pred_check
          %p357 = pneg %p161
        $region62: #{tpu_custom_call.1} parent=43 // pred_check_branch
          %359 = sbr.rel (%p357) target = $region64
        $region63: #{tpu_custom_call.1} parent=43 // pred_region
          %361 = dma.done %s353, 4096
        $region64: #{tpu_custom_call.1} parent=43 // pred_fallthru
          _
        %s362 = sand.u32 %s30, 1
        %s363 = scalar_lea.sflag [#allocation3], %s362
        %s364 = sand.u32 %s38, 1
        %s365 = smul.addr %s364, 16
        %s366 = scalar_lea.vmem [#allocation2], %s365
        %p367 = pneg %p51
        %p368 = pneg %p48
        %p369 = pneg %p72
        %p370 = pneg %p69
        %p371 = pneg %p93
        %p372 = pneg %p90
        %p373 = pneg %p114
        %p374 = pneg %p111
        %p375 = pneg %p135
        %p376 = pneg %p132
        %s377 = sand.u32 %s30, 1
        %s378 = scalar_lea.sflag [#allocation3], %s377
        %s379 = sand.u32 %s148, 1
        %s380 = smul.addr %s379, 256
        %s381 = scalar_lea.vmem [#allocation10], %s380
        %p382 = pneg %p161
        %p383 = pneg %p158
        %p384 = pneg %p187
        %p385 = pneg %p184
        %s386 = sand.u32 %s174, 1
        %s387 = scalar_lea.sflag [#allocation4], %s386
        %s388 = sand.u32 %s174, 1
        %s389 = smul.addr %s388, 128
        %s390 = scalar_lea.vmem [#allocation11], %s389
        %p391 = pneg %p213
        %p392 = pneg %p210
        %s393 = sand.u32 %s200, 1
        %s394 = scalar_lea.sflag [#allocation13], %s393
        %s395 = sand.u32 %s200, 1
        %s396 = smul.addr %s395, 16
        %s397 = scalar_lea.vmem [#allocation12], %s396
        %s398 = smul.u32 2, %s30
        %s399 = smul.u32 2, %s30
        %s400 = smul.u32 2, %s30
        %s401 = smul.u32 2, %s30
        %v403 = vld [vmem:[%s331] sm:$0xff]
        %v404 = vld [vmem:[%s331 + $0x8] sm:$0xff]
        %v405 = vpack.c.bf16 %v404, %v403
        %v406 = vld [vmem:[#allocation5] sm:$0xf]
        %v407 = vld [vmem:[#allocation5 + $0x4] sm:$0xf]
        %v408 = vld [vmem:[#allocation5 + $0x8] sm:$0xf]
        %v409 = vld [vmem:[#allocation5 + $0xc] sm:$0xf]
        %v410 = vld [vmem:[%s2] sm:$0x1]
        %v412 = vperm.slane %v410, 0
        %v418 = vunpack.c.l.b16 %v406
        %v419 = vunpack.c.l.b16 %v407
        %v420 = vunpack.c.l.b16 %v408
        %v421 = vunpack.c.l.b16 %v409
        %v422 = vpack.c.b16 %v419, %v418
        %v423 = vpack.c.b16 %v421, %v420
        %vm426 = vcmask 261120
        %v428 = vsel %vm426, %v405, 0
        %430 = vmatpush.bf16.msra.mxu0 0
        %431 = vmatpush.bf16.msra.mxu0 0
        %432 = vmatpush.bf16.msra.mxu0 0
        %433 = vmatpush.bf16.msra.mxu0 0
        %434 = vmatpush.bf16.msra.mxu0 0
        %435 = vmatpush.bf16.msra.mxu0 0
        %436 = vmatpush.bf16.msra.mxu0 %v423
        %437 = vmatpush.bf16.msra.mxu0 %v422
        %438 = vmatmul.bf16.gmra.mxu0 %v428
        %v439 = vpop.f32.mrf.mxu0
        %v440 = vadd.f32 %v412, %v439
        %v441 = vpop.f32.mrf.mxu0
        %v442 = vadd.f32 %v412, %v441
        %443 = vdwg.mxu0
        %v444 = vmax.f32 %v440, 0.0
        %v445 = vmax.f32 %v442, 0.0
        %v446 = vpack.c.bf16 %v445, %v444
        %v447 = vld [vmem:[#allocation7] sm:$0xff]
        %v448 = vld [vmem:[#allocation7 + $0x8] sm:$0xff]
        %v449 = vld [vmem:[#allocation7 + $0x10] sm:$0xff]
        %v450 = vld [vmem:[#allocation7 + $0x18] sm:$0xff]
        %v451 = vld [vmem:[#allocation7 + $0x20] sm:$0xff]
        %v452 = vld [vmem:[#allocation7 + $0x28] sm:$0xff]
        %v453 = vld [vmem:[#allocation7 + $0x30] sm:$0xff]
        %v454 = vld [vmem:[#allocation7 + $0x38] sm:$0xff]
        %v455 = vld [vmem:[#allocation7 + $0x40] sm:$0xff]
        %v456 = vld [vmem:[#allocation7 + $0x48] sm:$0xff]
        %v457 = vld [vmem:[#allocation7 + $0x50] sm:$0xff]
        %v458 = vld [vmem:[#allocation7 + $0x58] sm:$0xff]
        %v459 = vld [vmem:[#allocation7 + $0x60] sm:$0xff]
        %v460 = vld [vmem:[#allocation7 + $0x68] sm:$0xff]
        %v461 = vld [vmem:[#allocation7 + $0x70] sm:$0xff]
        %v462 = vld [vmem:[#allocation7 + $0x78] sm:$0xff]
        %v463 = vld [vmem:[#allocation7 + $0x80] sm:$0xff]
        %v464 = vld [vmem:[#allocation7 + $0x88] sm:$0xff]
        %v465 = vld [vmem:[#allocation7 + $0x90] sm:$0xff]
        %v466 = vld [vmem:[#allocation7 + $0x98] sm:$0xff]
        %v467 = vld [vmem:[#allocation7 + $0xa0] sm:$0xff]
        %v468 = vld [vmem:[#allocation7 + $0xa8] sm:$0xff]
        %v469 = vld [vmem:[#allocation7 + $0xb0] sm:$0xff]
        %v470 = vld [vmem:[#allocation7 + $0xb8] sm:$0xff]
        %v471 = vld [vmem:[#allocation7 + $0xc0] sm:$0xff]
        %v472 = vld [vmem:[#allocation7 + $0xc8] sm:$0xff]
        %v473 = vld [vmem:[#allocation7 + $0xd0] sm:$0xff]
        %v474 = vld [vmem:[#allocation7 + $0xd8] sm:$0xff]
        %v475 = vld [vmem:[#allocation7 + $0xe0] sm:$0xff]
        %v476 = vld [vmem:[#allocation7 + $0xe8] sm:$0xff]
        %v477 = vld [vmem:[#allocation7 + $0xf0] sm:$0xff]
        %v478 = vld [vmem:[#allocation7 + $0xf8] sm:$0xff]
        %v479 = vld [vmem:[#allocation8] sm:$0xff]
        %v480 = vld [vmem:[#allocation8 + $0x8] sm:$0xff]
        %v483 = vperm.slane %v479, 0
        %v484 = vperm.slane %v479, 1
        %v485 = vperm.slane %v479, 2
        %v486 = vperm.slane %v479, 3
        %v487 = vperm.slane %v479, 4
        %v488 = vperm.slane %v479, 5
        %v489 = vperm.slane %v479, 6
        %v490 = vperm.slane %v479, 7
        %v491 = vperm.slane %v480, 0
        %v492 = vperm.slane %v480, 1
        %v493 = vperm.slane %v480, 2
        %v494 = vperm.slane %v480, 3
        %v495 = vperm.slane %v480, 4
        %v496 = vperm.slane %v480, 5
        %v497 = vperm.slane %v480, 6
        %v498 = vperm.slane %v480, 7
        %v547 = vunpack.c.l.b16 %v447
        %v548 = vunpack.c.h.b16 %v447
        %v549 = vunpack.c.l.b16 %v448
        %v550 = vunpack.c.h.b16 %v448
        %v551 = vunpack.c.l.b16 %v449
        %v552 = vunpack.c.h.b16 %v449
        %v553 = vunpack.c.l.b16 %v450
        %v554 = vunpack.c.h.b16 %v450
        %v555 = vunpack.c.l.b16 %v451
        %v556 = vunpack.c.h.b16 %v451
        %v557 = vunpack.c.l.b16 %v452
        %v558 = vunpack.c.h.b16 %v452
        %v559 = vunpack.c.l.b16 %v453
        %v560 = vunpack.c.h.b16 %v453
        %v561 = vunpack.c.l.b16 %v454
        %v562 = vunpack.c.h.b16 %v454
        %v563 = vunpack.c.l.b16 %v455
        %v564 = vunpack.c.h.b16 %v455
        %v565 = vunpack.c.l.b16 %v456
        %v566 = vunpack.c.h.b16 %v456
        %v567 = vunpack.c.l.b16 %v457
        %v568 = vunpack.c.h.b16 %v457
        %v569 = vunpack.c.l.b16 %v458
        %v570 = vunpack.c.h.b16 %v458
        %v571 = vunpack.c.l.b16 %v459
        %v572 = vunpack.c.h.b16 %v459
        %v573 = vunpack.c.l.b16 %v460
        %v574 = vunpack.c.h.b16 %v460
        %v575 = vunpack.c.l.b16 %v461
        %v576 = vunpack.c.h.b16 %v461
        %v577 = vunpack.c.l.b16 %v462
        %v578 = vunpack.c.h.b16 %v462
        %v579 = vunpack.c.l.b16 %v463
        %v580 = vunpack.c.h.b16 %v463
        %v581 = vunpack.c.l.b16 %v464
        %v582 = vunpack.c.h.b16 %v464
        %v583 = vunpack.c.l.b16 %v465
        %v584 = vunpack.c.h.b16 %v465
        %v585 = vunpack.c.l.b16 %v466
        %v586 = vunpack.c.h.b16 %v466
        %v587 = vunpack.c.l.b16 %v467
        %v588 = vunpack.c.h.b16 %v467
        %v589 = vunpack.c.l.b16 %v468
        %v590 = vunpack.c.h.b16 %v468
        %v591 = vunpack.c.l.b16 %v469
        %v592 = vunpack.c.h.b16 %v469
        %v593 = vunpack.c.l.b16 %v470
        %v594 = vunpack.c.h.b16 %v470
        %v595 = vunpack.c.l.b16 %v471
        %v596 = vunpack.c.h.b16 %v471
        %v597 = vunpack.c.l.b16 %v472
        %v598 = vunpack.c.h.b16 %v472
        %v599 = vunpack.c.l.b16 %v473
        %v600 = vunpack.c.h.b16 %v473
        %v601 = vunpack.c.l.b16 %v474
        %v602 = vunpack.c.h.b16 %v474
        %v603 = vunpack.c.l.b16 %v475
        %v604 = vunpack.c.h.b16 %v475
        %v605 = vunpack.c.l.b16 %v476
        %v606 = vunpack.c.h.b16 %v476
        %v607 = vunpack.c.l.b16 %v477
        %v608 = vunpack.c.h.b16 %v477
        %v609 = vunpack.c.l.b16 %v478
        %v610 = vunpack.c.h.b16 %v478
        %v611 = vpack.c.b16 %v563, %v547
        %v612 = vpack.c.b16 %v564, %v548
        %v613 = vpack.c.b16 %v565, %v549
        %v614 = vpack.c.b16 %v566, %v550
        %v615 = vpack.c.b16 %v567, %v551
        %v616 = vpack.c.b16 %v568, %v552
        %v617 = vpack.c.b16 %v569, %v553
        %v618 = vpack.c.b16 %v570, %v554
        %v619 = vpack.c.b16 %v571, %v555
        %v620 = vpack.c.b16 %v572, %v556
        %v621 = vpack.c.b16 %v573, %v557
        %v622 = vpack.c.b16 %v574, %v558
        %v623 = vpack.c.b16 %v575, %v559
        %v624 = vpack.c.b16 %v576, %v560
        %v625 = vpack.c.b16 %v577, %v561
        %v626 = vpack.c.b16 %v578, %v562
        %v627 = vpack.c.b16 %v595, %v579
        %v628 = vpack.c.b16 %v596, %v580
        %v629 = vpack.c.b16 %v597, %v581
        %v630 = vpack.c.b16 %v598, %v582
        %v631 = vpack.c.b16 %v599, %v583
        %v632 = vpack.c.b16 %v600, %v584
        %v633 = vpack.c.b16 %v601, %v585
        %v634 = vpack.c.b16 %v602, %v586
        %v635 = vpack.c.b16 %v603, %v587
        %v636 = vpack.c.b16 %v604, %v588
        %v637 = vpack.c.b16 %v605, %v589
        %v638 = vpack.c.b16 %v606, %v590
        %v639 = vpack.c.b16 %v607, %v591
        %v640 = vpack.c.b16 %v608, %v592
        %v641 = vpack.c.b16 %v609, %v593
        %v642 = vpack.c.b16 %v610, %v594
        %v676 = vsel %vm426, %v446, 0
        %678 = vmatpush.bf16.msra.mxu0 0
        %679 = vmatpush.bf16.msra.mxu0 0
        %680 = vmatpush.bf16.msra.mxu0 0
        %681 = vmatpush.bf16.msra.mxu0 0
        %682 = vmatpush.bf16.msra.mxu0 0
        %683 = vmatpush.bf16.msra.mxu0 0
        %684 = vmatpush.bf16.msra.mxu0 %v627
        %685 = vmatpush.bf16.msra.mxu0 %v611
        %686 = vmatmul.bf16.gmra.mxu0 %v676
        %v687 = vpop.f32.mrf.mxu0
        %v688 = vadd.f32 %v483, %v687
        %v689 = vpop.f32.mrf.mxu0
        %v690 = vadd.f32 %v483, %v689
        %691 = vdwg.mxu0
        %692 = vmatpush.bf16.msra.mxu0 0
        %693 = vmatpush.bf16.msra.mxu0 0
        %694 = vmatpush.bf16.msra.mxu0 0
        %695 = vmatpush.bf16.msra.mxu0 0
        %696 = vmatpush.bf16.msra.mxu0 0
        %697 = vmatpush.bf16.msra.mxu0 0
        %698 = vmatpush.bf16.msra.mxu0 %v628
        %699 = vmatpush.bf16.msra.mxu0 %v612
        %700 = vmatmul.bf16.gmra.mxu0 %v676
        %v701 = vpop.f32.mrf.mxu0
        %v702 = vadd.f32 %v484, %v701
        %v703 = vpop.f32.mrf.mxu0
        %v704 = vadd.f32 %v484, %v703
        %705 = vdwg.mxu0
        %706 = vmatpush.bf16.msra.mxu0 0
        %707 = vmatpush.bf16.msra.mxu0 0
        %708 = vmatpush.bf16.msra.mxu0 0
        %709 = vmatpush.bf16.msra.mxu0 0
        %710 = vmatpush.bf16.msra.mxu0 0
        %711 = vmatpush.bf16.msra.mxu0 0
        %712 = vmatpush.bf16.msra.mxu0 %v629
        %713 = vmatpush.bf16.msra.mxu0 %v613
        %714 = vmatmul.bf16.gmra.mxu0 %v676
        %v715 = vpop.f32.mrf.mxu0
        %v716 = vadd.f32 %v485, %v715
        %v717 = vpop.f32.mrf.mxu0
        %v718 = vadd.f32 %v485, %v717
        %719 = vdwg.mxu0
        %720 = vmatpush.bf16.msra.mxu0 0
        %721 = vmatpush.bf16.msra.mxu0 0
        %722 = vmatpush.bf16.msra.mxu0 0
        %723 = vmatpush.bf16.msra.mxu0 0
        %724 = vmatpush.bf16.msra.mxu0 0
        %725 = vmatpush.bf16.msra.mxu0 0
        %726 = vmatpush.bf16.msra.mxu0 %v630
        %727 = vmatpush.bf16.msra.mxu0 %v614
        %728 = vmatmul.bf16.gmra.mxu0 %v676
        %v729 = vpop.f32.mrf.mxu0
        %v730 = vadd.f32 %v486, %v729
        %v731 = vpop.f32.mrf.mxu0
        %v732 = vadd.f32 %v486, %v731
        %733 = vdwg.mxu0
        %734 = vmatpush.bf16.msra.mxu0 0
        %735 = vmatpush.bf16.msra.mxu0 0
        %736 = vmatpush.bf16.msra.mxu0 0
        %737 = vmatpush.bf16.msra.mxu0 0
        %738 = vmatpush.bf16.msra.mxu0 0
        %739 = vmatpush.bf16.msra.mxu0 0
        %740 = vmatpush.bf16.msra.mxu0 %v631
        %741 = vmatpush.bf16.msra.mxu0 %v615
        %742 = vmatmul.bf16.gmra.mxu0 %v676
        %v743 = vpop.f32.mrf.mxu0
        %v744 = vadd.f32 %v487, %v743
        %v745 = vpop.f32.mrf.mxu0
        %v746 = vadd.f32 %v487, %v745
        %747 = vdwg.mxu0
        %748 = vmatpush.bf16.msra.mxu0 0
        %749 = vmatpush.bf16.msra.mxu0 0
        %750 = vmatpush.bf16.msra.mxu0 0
        %751 = vmatpush.bf16.msra.mxu0 0
        %752 = vmatpush.bf16.msra.mxu0 0
        %753 = vmatpush.bf16.msra.mxu0 0
        %754 = vmatpush.bf16.msra.mxu0 %v632
        %755 = vmatpush.bf16.msra.mxu0 %v616
        %756 = vmatmul.bf16.gmra.mxu0 %v676
        %v757 = vpop.f32.mrf.mxu0
        %v758 = vadd.f32 %v488, %v757
        %v759 = vpop.f32.mrf.mxu0
        %v760 = vadd.f32 %v488, %v759
        %761 = vdwg.mxu0
        %762 = vmatpush.bf16.msra.mxu0 0
        %763 = vmatpush.bf16.msra.mxu0 0
        %764 = vmatpush.bf16.msra.mxu0 0
        %765 = vmatpush.bf16.msra.mxu0 0
        %766 = vmatpush.bf16.msra.mxu0 0
        %767 = vmatpush.bf16.msra.mxu0 0
        %768 = vmatpush.bf16.msra.mxu0 %v633
        %769 = vmatpush.bf16.msra.mxu0 %v617
        %770 = vmatmul.bf16.gmra.mxu0 %v676
        %v771 = vpop.f32.mrf.mxu0
        %v772 = vadd.f32 %v489, %v771
        %v773 = vpop.f32.mrf.mxu0
        %v774 = vadd.f32 %v489, %v773
        %775 = vdwg.mxu0
        %776 = vmatpush.bf16.msra.mxu0 0
        %777 = vmatpush.bf16.msra.mxu0 0
        %778 = vmatpush.bf16.msra.mxu0 0
        %779 = vmatpush.bf16.msra.mxu0 0
        %780 = vmatpush.bf16.msra.mxu0 0
        %781 = vmatpush.bf16.msra.mxu0 0
        %782 = vmatpush.bf16.msra.mxu0 %v634
        %783 = vmatpush.bf16.msra.mxu0 %v618
        %784 = vmatmul.bf16.gmra.mxu0 %v676
        %v785 = vpop.f32.mrf.mxu0
        %v786 = vadd.f32 %v490, %v785
        %v787 = vpop.f32.mrf.mxu0
        %v788 = vadd.f32 %v490, %v787
        %789 = vdwg.mxu0
        %790 = vmatpush.bf16.msra.mxu0 0
        %791 = vmatpush.bf16.msra.mxu0 0
        %792 = vmatpush.bf16.msra.mxu0 0
        %793 = vmatpush.bf16.msra.mxu0 0
        %794 = vmatpush.bf16.msra.mxu0 0
        %795 = vmatpush.bf16.msra.mxu0 0
        %796 = vmatpush.bf16.msra.mxu0 %v635
        %797 = vmatpush.bf16.msra.mxu0 %v619
        %798 = vmatmul.bf16.gmra.mxu0 %v676
        %v799 = vpop.f32.mrf.mxu0
        %v800 = vadd.f32 %v491, %v799
        %v801 = vpop.f32.mrf.mxu0
        %v802 = vadd.f32 %v491, %v801
        %803 = vdwg.mxu0
        %804 = vmatpush.bf16.msra.mxu0 0
        %805 = vmatpush.bf16.msra.mxu0 0
        %806 = vmatpush.bf16.msra.mxu0 0
        %807 = vmatpush.bf16.msra.mxu0 0
        %808 = vmatpush.bf16.msra.mxu0 0
        %809 = vmatpush.bf16.msra.mxu0 0
        %810 = vmatpush.bf16.msra.mxu0 %v636
        %811 = vmatpush.bf16.msra.mxu0 %v620
        %812 = vmatmul.bf16.gmra.mxu0 %v676
        %v813 = vpop.f32.mrf.mxu0
        %v814 = vadd.f32 %v492, %v813
        %v815 = vpop.f32.mrf.mxu0
        %v816 = vadd.f32 %v492, %v815
        %817 = vdwg.mxu0
        %818 = vmatpush.bf16.msra.mxu0 0
        %819 = vmatpush.bf16.msra.mxu0 0
        %820 = vmatpush.bf16.msra.mxu0 0
        %821 = vmatpush.bf16.msra.mxu0 0
        %822 = vmatpush.bf16.msra.mxu0 0
        %823 = vmatpush.bf16.msra.mxu0 0
        %824 = vmatpush.bf16.msra.mxu0 %v637
        %825 = vmatpush.bf16.msra.mxu0 %v621
        %826 = vmatmul.bf16.gmra.mxu0 %v676
        %v827 = vpop.f32.mrf.mxu0
        %v828 = vadd.f32 %v493, %v827
        %v829 = vpop.f32.mrf.mxu0
        %v830 = vadd.f32 %v493, %v829
        %831 = vdwg.mxu0
        %832 = vmatpush.bf16.msra.mxu0 0
        %833 = vmatpush.bf16.msra.mxu0 0
        %834 = vmatpush.bf16.msra.mxu0 0
        %835 = vmatpush.bf16.msra.mxu0 0
        %836 = vmatpush.bf16.msra.mxu0 0
        %837 = vmatpush.bf16.msra.mxu0 0
        %838 = vmatpush.bf16.msra.mxu0 %v638
        %839 = vmatpush.bf16.msra.mxu0 %v622
        %840 = vmatmul.bf16.gmra.mxu0 %v676
        %v841 = vpop.f32.mrf.mxu0
        %v842 = vadd.f32 %v494, %v841
        %v843 = vpop.f32.mrf.mxu0
        %v844 = vadd.f32 %v494, %v843
        %845 = vdwg.mxu0
        %846 = vmatpush.bf16.msra.mxu0 0
        %847 = vmatpush.bf16.msra.mxu0 0
        %848 = vmatpush.bf16.msra.mxu0 0
        %849 = vmatpush.bf16.msra.mxu0 0
        %850 = vmatpush.bf16.msra.mxu0 0
        %851 = vmatpush.bf16.msra.mxu0 0
        %852 = vmatpush.bf16.msra.mxu0 %v639
        %853 = vmatpush.bf16.msra.mxu0 %v623
        %854 = vmatmul.bf16.gmra.mxu0 %v676
        %v855 = vpop.f32.mrf.mxu0
        %v856 = vadd.f32 %v495, %v855
        %v857 = vpop.f32.mrf.mxu0
        %v858 = vadd.f32 %v495, %v857
        %859 = vdwg.mxu0
        %860 = vmatpush.bf16.msra.mxu0 0
        %861 = vmatpush.bf16.msra.mxu0 0
        %862 = vmatpush.bf16.msra.mxu0 0
        %863 = vmatpush.bf16.msra.mxu0 0
        %864 = vmatpush.bf16.msra.mxu0 0
        %865 = vmatpush.bf16.msra.mxu0 0
        %866 = vmatpush.bf16.msra.mxu0 %v640
        %867 = vmatpush.bf16.msra.mxu0 %v624
        %868 = vmatmul.bf16.gmra.mxu0 %v676
        %v869 = vpop.f32.mrf.mxu0
        %v870 = vadd.f32 %v496, %v869
        %v871 = vpop.f32.mrf.mxu0
        %v872 = vadd.f32 %v496, %v871
        %873 = vdwg.mxu0
        %874 = vmatpush.bf16.msra.mxu0 0
        %875 = vmatpush.bf16.msra.mxu0 0
        %876 = vmatpush.bf16.msra.mxu0 0
        %877 = vmatpush.bf16.msra.mxu0 0
        %878 = vmatpush.bf16.msra.mxu0 0
        %879 = vmatpush.bf16.msra.mxu0 0
        %880 = vmatpush.bf16.msra.mxu0 %v641
        %881 = vmatpush.bf16.msra.mxu0 %v625
        %882 = vmatmul.bf16.gmra.mxu0 %v676
        %v883 = vpop.f32.mrf.mxu0
        %v884 = vadd.f32 %v497, %v883
        %v885 = vpop.f32.mrf.mxu0
        %v886 = vadd.f32 %v497, %v885
        %887 = vdwg.mxu0
        %888 = vmatpush.bf16.msra.mxu0 0
        %889 = vmatpush.bf16.msra.mxu0 0
        %890 = vmatpush.bf16.msra.mxu0 0
        %891 = vmatpush.bf16.msra.mxu0 0
        %892 = vmatpush.bf16.msra.mxu0 0
        %893 = vmatpush.bf16.msra.mxu0 0
        %894 = vmatpush.bf16.msra.mxu0 %v642
        %895 = vmatpush.bf16.msra.mxu0 %v626
        %896 = vmatmul.bf16.gmra.mxu0 %v676
        %v897 = vpop.f32.mrf.mxu0
        %v898 = vadd.f32 %v498, %v897
        %v899 = vpop.f32.mrf.mxu0
        %v900 = vadd.f32 %v498, %v899
        %901 = vdwg.mxu0
        %v902 = vand.u32 2147483647, %v688
        %v903 = vand.u32 2147483647, %v702
        %v904 = vand.u32 2147483647, %v716
        %v905 = vand.u32 2147483647, %v730
        %v906 = vand.u32 2147483647, %v744
        %v907 = vand.u32 2147483647, %v758
        %v908 = vand.u32 2147483647, %v772
        %v909 = vand.u32 2147483647, %v786
        %v910 = vand.u32 2147483647, %v800
        %v911 = vand.u32 2147483647, %v814
        %v912 = vand.u32 2147483647, %v828
        %v913 = vand.u32 2147483647, %v842
        %v914 = vand.u32 2147483647, %v856
        %v915 = vand.u32 2147483647, %v870
        %v916 = vand.u32 2147483647, %v884
        %v917 = vand.u32 2147483647, %v898
        %v918 = vand.u32 2147483647, %v690
        %v919 = vand.u32 2147483647, %v704
        %v920 = vand.u32 2147483647, %v718
        %v921 = vand.u32 2147483647, %v732
        %v922 = vand.u32 2147483647, %v746
        %v923 = vand.u32 2147483647, %v760
        %v924 = vand.u32 2147483647, %v774
        %v925 = vand.u32 2147483647, %v788
        %v926 = vand.u32 2147483647, %v802
        %v927 = vand.u32 2147483647, %v816
        %v928 = vand.u32 2147483647, %v830
        %v929 = vand.u32 2147483647, %v844
        %v930 = vand.u32 2147483647, %v858
        %v931 = vand.u32 2147483647, %v872
        %v932 = vand.u32 2147483647, %v886
        %v933 = vand.u32 2147483647, %v900
        %v934 = vsub.f32 0.0, %v902
        %v935 = vsub.f32 0.0, %v903
        %v936 = vsub.f32 0.0, %v904
        %v937 = vsub.f32 0.0, %v905
        %v938 = vsub.f32 0.0, %v906
        %v939 = vsub.f32 0.0, %v907
        %v940 = vsub.f32 0.0, %v908
        %v941 = vsub.f32 0.0, %v909
        %v942 = vsub.f32 0.0, %v910
        %v943 = vsub.f32 0.0, %v911
        %v944 = vsub.f32 0.0, %v912
        %v945 = vsub.f32 0.0, %v913
        %v946 = vsub.f32 0.0, %v914
        %v947 = vsub.f32 0.0, %v915
        %v948 = vsub.f32 0.0, %v916
        %v949 = vsub.f32 0.0, %v917
        %v950 = vsub.f32 0.0, %v918
        %v951 = vsub.f32 0.0, %v919
        %v952 = vsub.f32 0.0, %v920
        %v953 = vsub.f32 0.0, %v921
        %v954 = vsub.f32 0.0, %v922
        %v955 = vsub.f32 0.0, %v923
        %v956 = vsub.f32 0.0, %v924
        %v957 = vsub.f32 0.0, %v925
        %v958 = vsub.f32 0.0, %v926
        %v959 = vsub.f32 0.0, %v927
        %v960 = vsub.f32 0.0, %v928
        %v961 = vsub.f32 0.0, %v929
        %v962 = vsub.f32 0.0, %v930
        %v963 = vsub.f32 0.0, %v931
        %v964 = vsub.f32 0.0, %v932
        %v965 = vsub.f32 0.0, %v933
        %v966 = vmul.f32 %v934, 1.442695
        %v967 = vpow.pop %v966
        %v968 = vmul.f32 %v935, 1.442695
        %v969 = vpow.pop %v968
        %v970 = vmul.f32 %v936, 1.442695
        %v971 = vpow.pop %v970
        %v972 = vmul.f32 %v937, 1.442695
        %v973 = vpow.pop %v972
        %v974 = vmul.f32 %v938, 1.442695
        %v975 = vpow.pop %v974
        %v976 = vmul.f32 %v939, 1.442695
        %v977 = vpow.pop %v976
        %v978 = vmul.f32 %v940, 1.442695
        %v979 = vpow.pop %v978
        %v980 = vmul.f32 %v941, 1.442695
        %v981 = vpow.pop %v980
        %v982 = vmul.f32 %v942, 1.442695
        %v983 = vpow.pop %v982
        %v984 = vmul.f32 %v943, 1.442695
        %v985 = vpow.pop %v984
        %v986 = vmul.f32 %v944, 1.442695
        %v987 = vpow.pop %v986
        %v988 = vmul.f32 %v945, 1.442695
        %v989 = vpow.pop %v988
        %v990 = vmul.f32 %v946, 1.442695
        %v991 = vpow.pop %v990
        %v992 = vmul.f32 %v947, 1.442695
        %v993 = vpow.pop %v992
        %v994 = vmul.f32 %v948, 1.442695
        %v995 = vpow.pop %v994
        %v996 = vmul.f32 %v949, 1.442695
        %v997 = vpow.pop %v996
        %v998 = vmul.f32 %v950, 1.442695
        %v999 = vpow.pop %v998
        %v1000 = vmul.f32 %v951, 1.442695
        %v1001 = vpow.pop %v1000
        %v1002 = vmul.f32 %v952, 1.442695
        %v1003 = vpow.pop %v1002
        %v1004 = vmul.f32 %v953, 1.442695
        %v1005 = vpow.pop %v1004
        %v1006 = vmul.f32 %v954, 1.442695
        %v1007 = vpow.pop %v1006
        %v1008 = vmul.f32 %v955, 1.442695
        %v1009 = vpow.pop %v1008
        %v1010 = vmul.f32 %v956, 1.442695
        %v1011 = vpow.pop %v1010
        %v1012 = vmul.f32 %v957, 1.442695
        %v1013 = vpow.pop %v1012
        %v1014 = vmul.f32 %v958, 1.442695
        %v1015 = vpow.pop %v1014
        %v1016 = vmul.f32 %v959, 1.442695
        %v1017 = vpow.pop %v1016
        %v1018 = vmul.f32 %v960, 1.442695
        %v1019 = vpow.pop %v1018
        %v1020 = vmul.f32 %v961, 1.442695
        %v1021 = vpow.pop %v1020
        %v1022 = vmul.f32 %v962, 1.442695
        %v1023 = vpow.pop %v1022
        %v1024 = vmul.f32 %v963, 1.442695
        %v1025 = vpow.pop %v1024
        %v1026 = vmul.f32 %v964, 1.442695
        %v1027 = vpow.pop %v1026
        %v1028 = vmul.f32 %v965, 1.442695
        %v1029 = vpow.pop %v1028
        %v1030 = vadd.f32 %v967, 1.0
        %v1031 = vlog2.pop %v1030
        %v1032 = vmul.f32 %v1031, 0.6931472
        %v1033 = vmul.f32 -0.5, %v967
        %v1034 = vadd.f32 %v1033, 1.0
        %v1035 = vmul.f32 %v1034, %v967
        %v1036 = vand.u32 2147483647, %v967
        %vm1037 = vcmp.lt.f32.partialorder %v1036, 0.0004427343
        %v1038 = vsel %vm1037, %v1035, %v1032
        %v1039 = vadd.f32 %v969, 1.0
        %v1040 = vlog2.pop %v1039
        %v1041 = vmul.f32 %v1040, 0.6931472
        %v1042 = vmul.f32 -0.5, %v969
        %v1043 = vadd.f32 %v1042, 1.0
        %v1044 = vmul.f32 %v1043, %v969
        %v1045 = vand.u32 2147483647, %v969
        %vm1046 = vcmp.lt.f32.partialorder %v1045, 0.0004427343
        %v1047 = vsel %vm1046, %v1044, %v1041
        %v1048 = vadd.f32 %v971, 1.0
        %v1049 = vlog2.pop %v1048
        %v1050 = vmul.f32 %v1049, 0.6931472
        %v1051 = vmul.f32 -0.5, %v971
        %v1052 = vadd.f32 %v1051, 1.0
        %v1053 = vmul.f32 %v1052, %v971
        %v1054 = vand.u32 2147483647, %v971
        %vm1055 = vcmp.lt.f32.partialorder %v1054, 0.0004427343
        %v1056 = vsel %vm1055, %v1053, %v1050
        %v1057 = vadd.f32 %v973, 1.0
        %v1058 = vlog2.pop %v1057
        %v1059 = vmul.f32 %v1058, 0.6931472
        %v1060 = vmul.f32 -0.5, %v973
        %v1061 = vadd.f32 %v1060, 1.0
        %v1062 = vmul.f32 %v1061, %v973
        %v1063 = vand.u32 2147483647, %v973
        %vm1064 = vcmp.lt.f32.partialorder %v1063, 0.0004427343
        %v1065 = vsel %vm1064, %v1062, %v1059
        %v1066 = vadd.f32 %v975, 1.0
        %v1067 = vlog2.pop %v1066
        %v1068 = vmul.f32 %v1067, 0.6931472
        %v1069 = vmul.f32 -0.5, %v975
        %v1070 = vadd.f32 %v1069, 1.0
        %v1071 = vmul.f32 %v1070, %v975
        %v1072 = vand.u32 2147483647, %v975
        %vm1073 = vcmp.lt.f32.partialorder %v1072, 0.0004427343
        %v1074 = vsel %vm1073, %v1071, %v1068
        %v1075 = vadd.f32 %v977, 1.0
        %v1076 = vlog2.pop %v1075
        %v1077 = vmul.f32 %v1076, 0.6931472
        %v1078 = vmul.f32 -0.5, %v977
        %v1079 = vadd.f32 %v1078, 1.0
        %v1080 = vmul.f32 %v1079, %v977
        %v1081 = vand.u32 2147483647, %v977
        %vm1082 = vcmp.lt.f32.partialorder %v1081, 0.0004427343
        %v1083 = vsel %vm1082, %v1080, %v1077
        %v1084 = vadd.f32 %v979, 1.0
        %v1085 = vlog2.pop %v1084
        %v1086 = vmul.f32 %v1085, 0.6931472
        %v1087 = vmul.f32 -0.5, %v979
        %v1088 = vadd.f32 %v1087, 1.0
        %v1089 = vmul.f32 %v1088, %v979
        %v1090 = vand.u32 2147483647, %v979
        %vm1091 = vcmp.lt.f32.partialorder %v1090, 0.0004427343
        %v1092 = vsel %vm1091, %v1089, %v1086
        %v1093 = vadd.f32 %v981, 1.0
        %v1094 = vlog2.pop %v1093
        %v1095 = vmul.f32 %v1094, 0.6931472
        %v1096 = vmul.f32 -0.5, %v981
        %v1097 = vadd.f32 %v1096, 1.0
        %v1098 = vmul.f32 %v1097, %v981
        %v1099 = vand.u32 2147483647, %v981
        %vm1100 = vcmp.lt.f32.partialorder %v1099, 0.0004427343
        %v1101 = vsel %vm1100, %v1098, %v1095
        %v1102 = vadd.f32 %v983, 1.0
        %v1103 = vlog2.pop %v1102
        %v1104 = vmul.f32 %v1103, 0.6931472
        %v1105 = vmul.f32 -0.5, %v983
        %v1106 = vadd.f32 %v1105, 1.0
        %v1107 = vmul.f32 %v1106, %v983
        %v1108 = vand.u32 2147483647, %v983
        %vm1109 = vcmp.lt.f32.partialorder %v1108, 0.0004427343
        %v1110 = vsel %vm1109, %v1107, %v1104
        %v1111 = vadd.f32 %v985, 1.0
        %v1112 = vlog2.pop %v1111
        %v1113 = vmul.f32 %v1112, 0.6931472
        %v1114 = vmul.f32 -0.5, %v985
        %v1115 = vadd.f32 %v1114, 1.0
        %v1116 = vmul.f32 %v1115, %v985
        %v1117 = vand.u32 2147483647, %v985
        %vm1118 = vcmp.lt.f32.partialorder %v1117, 0.0004427343
        %v1119 = vsel %vm1118, %v1116, %v1113
        %v1120 = vadd.f32 %v987, 1.0
        %v1121 = vlog2.pop %v1120
        %v1122 = vmul.f32 %v1121, 0.6931472
        %v1123 = vmul.f32 -0.5, %v987
        %v1124 = vadd.f32 %v1123, 1.0
        %v1125 = vmul.f32 %v1124, %v987
        %v1126 = vand.u32 2147483647, %v987
        %vm1127 = vcmp.lt.f32.partialorder %v1126, 0.0004427343
        %v1128 = vsel %vm1127, %v1125, %v1122
        %v1129 = vadd.f32 %v989, 1.0
        %v1130 = vlog2.pop %v1129
        %v1131 = vmul.f32 %v1130, 0.6931472
        %v1132 = vmul.f32 -0.5, %v989
        %v1133 = vadd.f32 %v1132, 1.0
        %v1134 = vmul.f32 %v1133, %v989
        %v1135 = vand.u32 2147483647, %v989
        %vm1136 = vcmp.lt.f32.partialorder %v1135, 0.0004427343
        %v1137 = vsel %vm1136, %v1134, %v1131
        %v1138 = vadd.f32 %v991, 1.0
        %v1139 = vlog2.pop %v1138
        %v1140 = vmul.f32 %v1139, 0.6931472
        %v1141 = vmul.f32 -0.5, %v991
        %v1142 = vadd.f32 %v1141, 1.0
        %v1143 = vmul.f32 %v1142, %v991
        %v1144 = vand.u32 2147483647, %v991
        %vm1145 = vcmp.lt.f32.partialorder %v1144, 0.0004427343
        %v1146 = vsel %vm1145, %v1143, %v1140
        %v1147 = vadd.f32 %v993, 1.0
        %v1148 = vlog2.pop %v1147
        %v1149 = vmul.f32 %v1148, 0.6931472
        %v1150 = vmul.f32 -0.5, %v993
        %v1151 = vadd.f32 %v1150, 1.0
        %v1152 = vmul.f32 %v1151, %v993
        %v1153 = vand.u32 2147483647, %v993
        %vm1154 = vcmp.lt.f32.partialorder %v1153, 0.0004427343
        %v1155 = vsel %vm1154, %v1152, %v1149
        %v1156 = vadd.f32 %v995, 1.0
        %v1157 = vlog2.pop %v1156
        %v1158 = vmul.f32 %v1157, 0.6931472
        %v1159 = vmul.f32 -0.5, %v995
        %v1160 = vadd.f32 %v1159, 1.0
        %v1161 = vmul.f32 %v1160, %v995
        %v1162 = vand.u32 2147483647, %v995
        %vm1163 = vcmp.lt.f32.partialorder %v1162, 0.0004427343
        %v1164 = vsel %vm1163, %v1161, %v1158
        %v1165 = vadd.f32 %v997, 1.0
        %v1166 = vlog2.pop %v1165
        %v1167 = vmul.f32 %v1166, 0.6931472
        %v1168 = vmul.f32 -0.5, %v997
        %v1169 = vadd.f32 %v1168, 1.0
        %v1170 = vmul.f32 %v1169, %v997
        %v1171 = vand.u32 2147483647, %v997
        %vm1172 = vcmp.lt.f32.partialorder %v1171, 0.0004427343
        %v1173 = vsel %vm1172, %v1170, %v1167
        %v1174 = vadd.f32 %v999, 1.0
        %v1175 = vlog2.pop %v1174
        %v1176 = vmul.f32 %v1175, 0.6931472
        %v1177 = vmul.f32 -0.5, %v999
        %v1178 = vadd.f32 %v1177, 1.0
        %v1179 = vmul.f32 %v1178, %v999
        %v1180 = vand.u32 2147483647, %v999
        %vm1181 = vcmp.lt.f32.partialorder %v1180, 0.0004427343
        %v1182 = vsel %vm1181, %v1179, %v1176
        %v1183 = vadd.f32 %v1001, 1.0
        %v1184 = vlog2.pop %v1183
        %v1185 = vmul.f32 %v1184, 0.6931472
        %v1186 = vmul.f32 -0.5, %v1001
        %v1187 = vadd.f32 %v1186, 1.0
        %v1188 = vmul.f32 %v1187, %v1001
        %v1189 = vand.u32 2147483647, %v1001
        %vm1190 = vcmp.lt.f32.partialorder %v1189, 0.0004427343
        %v1191 = vsel %vm1190, %v1188, %v1185
        %v1192 = vadd.f32 %v1003, 1.0
        %v1193 = vlog2.pop %v1192
        %v1194 = vmul.f32 %v1193, 0.6931472
        %v1195 = vmul.f32 -0.5, %v1003
        %v1196 = vadd.f32 %v1195, 1.0
        %v1197 = vmul.f32 %v1196, %v1003
        %v1198 = vand.u32 2147483647, %v1003
        %vm1199 = vcmp.lt.f32.partialorder %v1198, 0.0004427343
        %v1200 = vsel %vm1199, %v1197, %v1194
        %v1201 = vadd.f32 %v1005, 1.0
        %v1202 = vlog2.pop %v1201
        %v1203 = vmul.f32 %v1202, 0.6931472
        %v1204 = vmul.f32 -0.5, %v1005
        %v1205 = vadd.f32 %v1204, 1.0
        %v1206 = vmul.f32 %v1205, %v1005
        %v1207 = vand.u32 2147483647, %v1005
        %vm1208 = vcmp.lt.f32.partialorder %v1207, 0.0004427343
        %v1209 = vsel %vm1208, %v1206, %v1203
        %v1210 = vadd.f32 %v1007, 1.0
        %v1211 = vlog2.pop %v1210
        %v1212 = vmul.f32 %v1211, 0.6931472
        %v1213 = vmul.f32 -0.5, %v1007
        %v1214 = vadd.f32 %v1213, 1.0
        %v1215 = vmul.f32 %v1214, %v1007
        %v1216 = vand.u32 2147483647, %v1007
        %vm1217 = vcmp.lt.f32.partialorder %v1216, 0.0004427343
        %v1218 = vsel %vm1217, %v1215, %v1212
        %v1219 = vadd.f32 %v1009, 1.0
        %v1220 = vlog2.pop %v1219
        %v1221 = vmul.f32 %v1220, 0.6931472
        %v1222 = vmul.f32 -0.5, %v1009
        %v1223 = vadd.f32 %v1222, 1.0
        %v1224 = vmul.f32 %v1223, %v1009
        %v1225 = vand.u32 2147483647, %v1009
        %vm1226 = vcmp.lt.f32.partialorder %v1225, 0.0004427343
        %v1227 = vsel %vm1226, %v1224, %v1221
        %v1228 = vadd.f32 %v1011, 1.0
        %v1229 = vlog2.pop %v1228
        %v1230 = vmul.f32 %v1229, 0.6931472
        %v1231 = vmul.f32 -0.5, %v1011
        %v1232 = vadd.f32 %v1231, 1.0
        %v1233 = vmul.f32 %v1232, %v1011
        %v1234 = vand.u32 2147483647, %v1011
        %vm1235 = vcmp.lt.f32.partialorder %v1234, 0.0004427343
        %v1236 = vsel %vm1235, %v1233, %v1230
        %v1237 = vadd.f32 %v1013, 1.0
        %v1238 = vlog2.pop %v1237
        %v1239 = vmul.f32 %v1238, 0.6931472
        %v1240 = vmul.f32 -0.5, %v1013
        %v1241 = vadd.f32 %v1240, 1.0
        %v1242 = vmul.f32 %v1241, %v1013
        %v1243 = vand.u32 2147483647, %v1013
        %vm1244 = vcmp.lt.f32.partialorder %v1243, 0.0004427343
        %v1245 = vsel %vm1244, %v1242, %v1239
        %v1246 = vadd.f32 %v1015, 1.0
        %v1247 = vlog2.pop %v1246
        %v1248 = vmul.f32 %v1247, 0.6931472
        %v1249 = vmul.f32 -0.5, %v1015
        %v1250 = vadd.f32 %v1249, 1.0
        %v1251 = vmul.f32 %v1250, %v1015
        %v1252 = vand.u32 2147483647, %v1015
        %vm1253 = vcmp.lt.f32.partialorder %v1252, 0.0004427343
        %v1254 = vsel %vm1253, %v1251, %v1248
        %v1255 = vadd.f32 %v1017, 1.0
        %v1256 = vlog2.pop %v1255
        %v1257 = vmul.f32 %v1256, 0.6931472
        %v1258 = vmul.f32 -0.5, %v1017
        %v1259 = vadd.f32 %v1258, 1.0
        %v1260 = vmul.f32 %v1259, %v1017
        %v1261 = vand.u32 2147483647, %v1017
        %vm1262 = vcmp.lt.f32.partialorder %v1261, 0.0004427343
        %v1263 = vsel %vm1262, %v1260, %v1257
        %v1264 = vadd.f32 %v1019, 1.0
        %v1265 = vlog2.pop %v1264
        %v1266 = vmul.f32 %v1265, 0.6931472
        %v1267 = vmul.f32 -0.5, %v1019
        %v1268 = vadd.f32 %v1267, 1.0
        %v1269 = vmul.f32 %v1268, %v1019
        %v1270 = vand.u32 2147483647, %v1019
        %vm1271 = vcmp.lt.f32.partialorder %v1270, 0.0004427343
        %v1272 = vsel %vm1271, %v1269, %v1266
        %v1273 = vadd.f32 %v1021, 1.0
        %v1274 = vlog2.pop %v1273
        %v1275 = vmul.f32 %v1274, 0.6931472
        %v1276 = vmul.f32 -0.5, %v1021
        %v1277 = vadd.f32 %v1276, 1.0
        %v1278 = vmul.f32 %v1277, %v1021
        %v1279 = vand.u32 2147483647, %v1021
        %vm1280 = vcmp.lt.f32.partialorder %v1279, 0.0004427343
        %v1281 = vsel %vm1280, %v1278, %v1275
        %v1282 = vadd.f32 %v1023, 1.0
        %v1283 = vlog2.pop %v1282
        %v1284 = vmul.f32 %v1283, 0.6931472
        %v1285 = vmul.f32 -0.5, %v1023
        %v1286 = vadd.f32 %v1285, 1.0
        %v1287 = vmul.f32 %v1286, %v1023
        %v1288 = vand.u32 2147483647, %v1023
        %vm1289 = vcmp.lt.f32.partialorder %v1288, 0.0004427343
        %v1290 = vsel %vm1289, %v1287, %v1284
        %v1291 = vadd.f32 %v1025, 1.0
        %v1292 = vlog2.pop %v1291
        %v1293 = vmul.f32 %v1292, 0.6931472
        %v1294 = vmul.f32 -0.5, %v1025
        %v1295 = vadd.f32 %v1294, 1.0
        %v1296 = vmul.f32 %v1295, %v1025
        %v1297 = vand.u32 2147483647, %v1025
        %vm1298 = vcmp.lt.f32.partialorder %v1297, 0.0004427343
        %v1299 = vsel %vm1298, %v1296, %v1293
        %v1300 = vadd.f32 %v1027, 1.0
        %v1301 = vlog2.pop %v1300
        %v1302 = vmul.f32 %v1301, 0.6931472
        %v1303 = vmul.f32 -0.5, %v1027
        %v1304 = vadd.f32 %v1303, 1.0
        %v1305 = vmul.f32 %v1304, %v1027
        %v1306 = vand.u32 2147483647, %v1027
        %vm1307 = vcmp.lt.f32.partialorder %v1306, 0.0004427343
        %v1308 = vsel %vm1307, %v1305, %v1302
        %v1309 = vadd.f32 %v1029, 1.0
        %v1310 = vlog2.pop %v1309
        %v1311 = vmul.f32 %v1310, 0.6931472
        %v1312 = vmul.f32 -0.5, %v1029
        %v1313 = vadd.f32 %v1312, 1.0
        %v1314 = vmul.f32 %v1313, %v1029
        %v1315 = vand.u32 2147483647, %v1029
        %vm1316 = vcmp.lt.f32.partialorder %v1315, 0.0004427343
        %v1317 = vsel %vm1316, %v1314, %v1311
        %v1318 = vmin.f32 %v688, 0.0
        %v1319 = vmin.f32 %v702, 0.0
        %v1320 = vmin.f32 %v716, 0.0
        %v1321 = vmin.f32 %v730, 0.0
        %v1322 = vmin.f32 %v744, 0.0
        %v1323 = vmin.f32 %v758, 0.0
        %v1324 = vmin.f32 %v772, 0.0
        %v1325 = vmin.f32 %v786, 0.0
        %v1326 = vmin.f32 %v800, 0.0
        %v1327 = vmin.f32 %v814, 0.0
        %v1328 = vmin.f32 %v828, 0.0
        %v1329 = vmin.f32 %v842, 0.0
        %v1330 = vmin.f32 %v856, 0.0
        %v1331 = vmin.f32 %v870, 0.0
        %v1332 = vmin.f32 %v884, 0.0
        %v1333 = vmin.f32 %v898, 0.0
        %v1334 = vmin.f32 %v690, 0.0
        %v1335 = vmin.f32 %v704, 0.0
        %v1336 = vmin.f32 %v718, 0.0
        %v1337 = vmin.f32 %v732, 0.0
        %v1338 = vmin.f32 %v746, 0.0
        %v1339 = vmin.f32 %v760, 0.0
        %v1340 = vmin.f32 %v774, 0.0
        %v1341 = vmin.f32 %v788, 0.0
        %v1342 = vmin.f32 %v802, 0.0
        %v1343 = vmin.f32 %v816, 0.0
        %v1344 = vmin.f32 %v830, 0.0
        %v1345 = vmin.f32 %v844, 0.0
        %v1346 = vmin.f32 %v858, 0.0
        %v1347 = vmin.f32 %v872, 0.0
        %v1348 = vmin.f32 %v886, 0.0
        %v1349 = vmin.f32 %v900, 0.0
        %v1350 = vsub.f32 %v1318, %v1038
        %v1351 = vsub.f32 %v1319, %v1047
        %v1352 = vsub.f32 %v1320, %v1056
        %v1353 = vsub.f32 %v1321, %v1065
        %v1354 = vsub.f32 %v1322, %v1074
        %v1355 = vsub.f32 %v1323, %v1083
        %v1356 = vsub.f32 %v1324, %v1092
        %v1357 = vsub.f32 %v1325, %v1101
        %v1358 = vsub.f32 %v1326, %v1110
        %v1359 = vsub.f32 %v1327, %v1119
        %v1360 = vsub.f32 %v1328, %v1128
        %v1361 = vsub.f32 %v1329, %v1137
        %v1362 = vsub.f32 %v1330, %v1146
        %v1363 = vsub.f32 %v1331, %v1155
        %v1364 = vsub.f32 %v1332, %v1164
        %v1365 = vsub.f32 %v1333, %v1173
        %v1366 = vsub.f32 %v1334, %v1182
        %v1367 = vsub.f32 %v1335, %v1191
        %v1368 = vsub.f32 %v1336, %v1200
        %v1369 = vsub.f32 %v1337, %v1209
        %v1370 = vsub.f32 %v1338, %v1218
        %v1371 = vsub.f32 %v1339, %v1227
        %v1372 = vsub.f32 %v1340, %v1236
        %v1373 = vsub.f32 %v1341, %v1245
        %v1374 = vsub.f32 %v1342, %v1254
        %v1375 = vsub.f32 %v1343, %v1263
        %v1376 = vsub.f32 %v1344, %v1272
        %v1377 = vsub.f32 %v1345, %v1281
        %v1378 = vsub.f32 %v1346, %v1290
        %v1379 = vsub.f32 %v1347, %v1299
        %v1380 = vsub.f32 %v1348, %v1308
        %v1381 = vsub.f32 %v1349, %v1317
        %v1382 = vpack.c.bf16 %v1351, %v1350
        %v1383 = vpack.c.bf16 %v1353, %v1352
        %v1384 = vpack.c.bf16 %v1355, %v1354
        %v1385 = vpack.c.bf16 %v1357, %v1356
        %v1386 = vpack.c.bf16 %v1359, %v1358
        %v1387 = vpack.c.bf16 %v1361, %v1360
        %v1388 = vpack.c.bf16 %v1363, %v1362
        %v1389 = vpack.c.bf16 %v1365, %v1364
        %v1390 = vpack.c.bf16 %v1367, %v1366
        %v1391 = vpack.c.bf16 %v1369, %v1368
        %v1392 = vpack.c.bf16 %v1371, %v1370
        %v1393 = vpack.c.bf16 %v1373, %v1372
        %v1394 = vpack.c.bf16 %v1375, %v1374
        %v1395 = vpack.c.bf16 %v1377, %v1376
        %v1396 = vpack.c.bf16 %v1379, %v1378
        %v1397 = vpack.c.bf16 %v1381, %v1380
        %1398 = vst [vmem:[%s390] sm:$0xff] %v1382
        %1399 = vst [vmem:[%s390 + $0x8] sm:$0xff] %v1383
        %1400 = vst [vmem:[%s390 + $0x10] sm:$0xff] %v1384
        %1401 = vst [vmem:[%s390 + $0x18] sm:$0xff] %v1385
        %1402 = vst [vmem:[%s390 + $0x20] sm:$0xff] %v1386
        %1403 = vst [vmem:[%s390 + $0x28] sm:$0xff] %v1387
        %1404 = vst [vmem:[%s390 + $0x30] sm:$0xff] %v1388
        %1405 = vst [vmem:[%s390 + $0x38] sm:$0xff] %v1389
        %1406 = vst [vmem:[%s390 + $0x40] sm:$0xff] %v1390
        %1407 = vst [vmem:[%s390 + $0x48] sm:$0xff] %v1391
        %1408 = vst [vmem:[%s390 + $0x50] sm:$0xff] %v1392
        %1409 = vst [vmem:[%s390 + $0x58] sm:$0xff] %v1393
        %1410 = vst [vmem:[%s390 + $0x60] sm:$0xff] %v1394
        %1411 = vst [vmem:[%s390 + $0x68] sm:$0xff] %v1395
        %1412 = vst [vmem:[%s390 + $0x70] sm:$0xff] %v1396
        %1413 = vst [vmem:[%s390 + $0x78] sm:$0xff] %v1397
        %vm1414 = vcmp.ge.f32.partialorder %v688, 0.0
        %vm1415 = vcmp.ge.f32.partialorder %v702, 0.0
        %vm1416 = vcmp.ge.f32.partialorder %v716, 0.0
        %vm1417 = vcmp.ge.f32.partialorder %v730, 0.0
        %vm1418 = vcmp.ge.f32.partialorder %v744, 0.0
        %vm1419 = vcmp.ge.f32.partialorder %v758, 0.0
        %vm1420 = vcmp.ge.f32.partialorder %v772, 0.0
        %vm1421 = vcmp.ge.f32.partialorder %v786, 0.0
        %vm1422 = vcmp.ge.f32.partialorder %v800, 0.0
        %vm1423 = vcmp.ge.f32.partialorder %v814, 0.0
        %vm1424 = vcmp.ge.f32.partialorder %v828, 0.0
        %vm1425 = vcmp.ge.f32.partialorder %v842, 0.0
        %vm1426 = vcmp.ge.f32.partialorder %v856, 0.0
        %vm1427 = vcmp.ge.f32.partialorder %v870, 0.0
        %vm1428 = vcmp.ge.f32.partialorder %v884, 0.0
        %vm1429 = vcmp.ge.f32.partialorder %v898, 0.0
        %vm1430 = vcmp.ge.f32.partialorder %v690, 0.0
        %vm1431 = vcmp.ge.f32.partialorder %v704, 0.0
        %vm1432 = vcmp.ge.f32.partialorder %v718, 0.0
        %vm1433 = vcmp.ge.f32.partialorder %v732, 0.0
        %vm1434 = vcmp.ge.f32.partialorder %v746, 0.0
        %vm1435 = vcmp.ge.f32.partialorder %v760, 0.0
        %vm1436 = vcmp.ge.f32.partialorder %v774, 0.0
        %vm1437 = vcmp.ge.f32.partialorder %v788, 0.0
        %vm1438 = vcmp.ge.f32.partialorder %v802, 0.0
        %vm1439 = vcmp.ge.f32.partialorder %v816, 0.0
        %vm1440 = vcmp.ge.f32.partialorder %v830, 0.0
        %vm1441 = vcmp.ge.f32.partialorder %v844, 0.0
        %vm1442 = vcmp.ge.f32.partialorder %v858, 0.0
        %vm1443 = vcmp.ge.f32.partialorder %v872, 0.0
        %vm1444 = vcmp.ge.f32.partialorder %v886, 0.0
        %vm1445 = vcmp.ge.f32.partialorder %v900, 0.0
        %v1446 = vadd.f32 %v967, 1.0
        %v1447 = vadd.f32 %v969, 1.0
        %v1448 = vadd.f32 %v971, 1.0
        %v1449 = vadd.f32 %v973, 1.0
        %v1450 = vadd.f32 %v975, 1.0
        %v1451 = vadd.f32 %v977, 1.0
        %v1452 = vadd.f32 %v979, 1.0
        %v1453 = vadd.f32 %v981, 1.0
        %v1454 = vadd.f32 %v983, 1.0
        %v1455 = vadd.f32 %v985, 1.0
        %v1456 = vadd.f32 %v987, 1.0
        %v1457 = vadd.f32 %v989, 1.0
        %v1458 = vadd.f32 %v991, 1.0
        %v1459 = vadd.f32 %v993, 1.0
        %v1460 = vadd.f32 %v995, 1.0
        %v1461 = vadd.f32 %v997, 1.0
        %v1462 = vadd.f32 %v999, 1.0
        %v1463 = vadd.f32 %v1001, 1.0
        %v1464 = vadd.f32 %v1003, 1.0
        %v1465 = vadd.f32 %v1005, 1.0
        %v1466 = vadd.f32 %v1007, 1.0
        %v1467 = vadd.f32 %v1009, 1.0
        %v1468 = vadd.f32 %v1011, 1.0
        %v1469 = vadd.f32 %v1013, 1.0
        %v1470 = vadd.f32 %v1015, 1.0
        %v1471 = vadd.f32 %v1017, 1.0
        %v1472 = vadd.f32 %v1019, 1.0
        %v1473 = vadd.f32 %v1021, 1.0
        %v1474 = vadd.f32 %v1023, 1.0
        %v1475 = vadd.f32 %v1025, 1.0
        %v1476 = vadd.f32 %v1027, 1.0
        %v1477 = vadd.f32 %v1029, 1.0
        %v1478 = vmul.f32 %v967, 2.0
        %v1479 = vmul.f32 %v969, 2.0
        %v1480 = vmul.f32 %v971, 2.0
        %v1481 = vmul.f32 %v973, 2.0
        %v1482 = vmul.f32 %v975, 2.0
        %v1483 = vmul.f32 %v977, 2.0
        %v1484 = vmul.f32 %v979, 2.0
        %v1485 = vmul.f32 %v981, 2.0
        %v1486 = vmul.f32 %v983, 2.0
        %v1487 = vmul.f32 %v985, 2.0
        %v1488 = vmul.f32 %v987, 2.0
        %v1489 = vmul.f32 %v989, 2.0
        %v1490 = vmul.f32 %v991, 2.0
        %v1491 = vmul.f32 %v993, 2.0
        %v1492 = vmul.f32 %v995, 2.0
        %v1493 = vmul.f32 %v997, 2.0
        %v1494 = vmul.f32 %v999, 2.0
        %v1495 = vmul.f32 %v1001, 2.0
        %v1496 = vmul.f32 %v1003, 2.0
        %v1497 = vmul.f32 %v1005, 2.0
        %v1498 = vmul.f32 %v1007, 2.0
        %v1499 = vmul.f32 %v1009, 2.0
        %v1500 = vmul.f32 %v1011, 2.0
        %v1501 = vmul.f32 %v1013, 2.0
        %v1502 = vmul.f32 %v1015, 2.0
        %v1503 = vmul.f32 %v1017, 2.0
        %v1504 = vmul.f32 %v1019, 2.0
        %v1505 = vmul.f32 %v1021, 2.0
        %v1506 = vmul.f32 %v1023, 2.0
        %v1507 = vmul.f32 %v1025, 2.0
        %v1508 = vmul.f32 %v1027, 2.0
        %v1509 = vmul.f32 %v1029, 2.0
        %v1510 = vsel %vm1414, %v1446, %v1478
        %v1511 = vsel %vm1415, %v1447, %v1479
        %v1512 = vsel %vm1416, %v1448, %v1480
        %v1513 = vsel %vm1417, %v1449, %v1481
        %v1514 = vsel %vm1418, %v1450, %v1482
        %v1515 = vsel %vm1419, %v1451, %v1483
        %v1516 = vsel %vm1420, %v1452, %v1484
        %v1517 = vsel %vm1421, %v1453, %v1485
        %v1518 = vsel %vm1422, %v1454, %v1486
        %v1519 = vsel %vm1423, %v1455, %v1487
        %v1520 = vsel %vm1424, %v1456, %v1488
        %v1521 = vsel %vm1425, %v1457, %v1489
        %v1522 = vsel %vm1426, %v1458, %v1490
        %v1523 = vsel %vm1427, %v1459, %v1491
        %v1524 = vsel %vm1428, %v1460, %v1492
        %v1525 = vsel %vm1429, %v1461, %v1493
        %v1526 = vsel %vm1430, %v1462, %v1494
        %v1527 = vsel %vm1431, %v1463, %v1495
        %v1528 = vsel %vm1432, %v1464, %v1496
        %v1529 = vsel %vm1433, %v1465, %v1497
        %v1530 = vsel %vm1434, %v1466, %v1498
        %v1531 = vsel %vm1435, %v1467, %v1499
        %v1532 = vsel %vm1436, %v1468, %v1500
        %v1533 = vsel %vm1437, %v1469, %v1501
        %v1534 = vsel %vm1438, %v1470, %v1502
        %v1535 = vsel %vm1439, %v1471, %v1503
        %v1536 = vsel %vm1440, %v1472, %v1504
        %v1537 = vsel %vm1441, %v1473, %v1505
        %v1538 = vsel %vm1442, %v1474, %v1506
        %v1539 = vsel %vm1443, %v1475, %v1507
        %v1540 = vsel %vm1444, %v1476, %v1508
        %v1541 = vsel %vm1445, %v1477, %v1509
        %v1542 = vadd.f32 %v1510, 1.0
        %v1543 = vlog2.pop %v1542
        %v1544 = vmul.f32 %v1543, 0.6931472
        %v1545 = vmul.f32 -0.5, %v1510
        %v1546 = vadd.f32 %v1545, 1.0
        %v1547 = vmul.f32 %v1546, %v1510
        %v1548 = vand.u32 2147483647, %v1510
        %vm1549 = vcmp.lt.f32.partialorder %v1548, 0.0004427343
        %v1550 = vsel %vm1549, %v1547, %v1544
        %v1551 = vadd.f32 %v1511, 1.0
        %v1552 = vlog2.pop %v1551
        %v1553 = vmul.f32 %v1552, 0.6931472
        %v1554 = vmul.f32 -0.5, %v1511
        %v1555 = vadd.f32 %v1554, 1.0
        %v1556 = vmul.f32 %v1555, %v1511
        %v1557 = vand.u32 2147483647, %v1511
        %vm1558 = vcmp.lt.f32.partialorder %v1557, 0.0004427343
        %v1559 = vsel %vm1558, %v1556, %v1553
        %v1560 = vadd.f32 %v1512, 1.0
        %v1561 = vlog2.pop %v1560
        %v1562 = vmul.f32 %v1561, 0.6931472
        %v1563 = vmul.f32 -0.5, %v1512
        %v1564 = vadd.f32 %v1563, 1.0
        %v1565 = vmul.f32 %v1564, %v1512
        %v1566 = vand.u32 2147483647, %v1512
        %vm1567 = vcmp.lt.f32.partialorder %v1566, 0.0004427343
        %v1568 = vsel %vm1567, %v1565, %v1562
        %v1569 = vadd.f32 %v1513, 1.0
        %v1570 = vlog2.pop %v1569
        %v1571 = vmul.f32 %v1570, 0.6931472
        %v1572 = vmul.f32 -0.5, %v1513
        %v1573 = vadd.f32 %v1572, 1.0
        %v1574 = vmul.f32 %v1573, %v1513
        %v1575 = vand.u32 2147483647, %v1513
        %vm1576 = vcmp.lt.f32.partialorder %v1575, 0.0004427343
        %v1577 = vsel %vm1576, %v1574, %v1571
        %v1578 = vadd.f32 %v1514, 1.0
        %v1579 = vlog2.pop %v1578
        %v1580 = vmul.f32 %v1579, 0.6931472
        %v1581 = vmul.f32 -0.5, %v1514
        %v1582 = vadd.f32 %v1581, 1.0
        %v1583 = vmul.f32 %v1582, %v1514
        %v1584 = vand.u32 2147483647, %v1514
        %vm1585 = vcmp.lt.f32.partialorder %v1584, 0.0004427343
        %v1586 = vsel %vm1585, %v1583, %v1580
        %v1587 = vadd.f32 %v1515, 1.0
        %v1588 = vlog2.pop %v1587
        %v1589 = vmul.f32 %v1588, 0.6931472
        %v1590 = vmul.f32 -0.5, %v1515
        %v1591 = vadd.f32 %v1590, 1.0
        %v1592 = vmul.f32 %v1591, %v1515
        %v1593 = vand.u32 2147483647, %v1515
        %vm1594 = vcmp.lt.f32.partialorder %v1593, 0.0004427343
        %v1595 = vsel %vm1594, %v1592, %v1589
        %v1596 = vadd.f32 %v1516, 1.0
        %v1597 = vlog2.pop %v1596
        %v1598 = vmul.f32 %v1597, 0.6931472
        %v1599 = vmul.f32 -0.5, %v1516
        %v1600 = vadd.f32 %v1599, 1.0
        %v1601 = vmul.f32 %v1600, %v1516
        %v1602 = vand.u32 2147483647, %v1516
        %vm1603 = vcmp.lt.f32.partialorder %v1602, 0.0004427343
        %v1604 = vsel %vm1603, %v1601, %v1598
        %v1605 = vadd.f32 %v1517, 1.0
        %v1606 = vlog2.pop %v1605
        %v1607 = vmul.f32 %v1606, 0.6931472
        %v1608 = vmul.f32 -0.5, %v1517
        %v1609 = vadd.f32 %v1608, 1.0
        %v1610 = vmul.f32 %v1609, %v1517
        %v1611 = vand.u32 2147483647, %v1517
        %vm1612 = vcmp.lt.f32.partialorder %v1611, 0.0004427343
        %v1613 = vsel %vm1612, %v1610, %v1607
        %v1614 = vadd.f32 %v1518, 1.0
        %v1615 = vlog2.pop %v1614
        %v1616 = vmul.f32 %v1615, 0.6931472
        %v1617 = vmul.f32 -0.5, %v1518
        %v1618 = vadd.f32 %v1617, 1.0
        %v1619 = vmul.f32 %v1618, %v1518
        %v1620 = vand.u32 2147483647, %v1518
        %vm1621 = vcmp.lt.f32.partialorder %v1620, 0.0004427343
        %v1622 = vsel %vm1621, %v1619, %v1616
        %v1623 = vadd.f32 %v1519, 1.0
        %v1624 = vlog2.pop %v1623
        %v1625 = vmul.f32 %v1624, 0.6931472
        %v1626 = vmul.f32 -0.5, %v1519
        %v1627 = vadd.f32 %v1626, 1.0
        %v1628 = vmul.f32 %v1627, %v1519
        %v1629 = vand.u32 2147483647, %v1519
        %vm1630 = vcmp.lt.f32.partialorder %v1629, 0.0004427343
        %v1631 = vsel %vm1630, %v1628, %v1625
        %v1632 = vadd.f32 %v1520, 1.0
        %v1633 = vlog2.pop %v1632
        %v1634 = vmul.f32 %v1633, 0.6931472
        %v1635 = vmul.f32 -0.5, %v1520
        %v1636 = vadd.f32 %v1635, 1.0
        %v1637 = vmul.f32 %v1636, %v1520
        %v1638 = vand.u32 2147483647, %v1520
        %vm1639 = vcmp.lt.f32.partialorder %v1638, 0.0004427343
        %v1640 = vsel %vm1639, %v1637, %v1634
        %v1641 = vadd.f32 %v1521, 1.0
        %v1642 = vlog2.pop %v1641
        %v1643 = vmul.f32 %v1642, 0.6931472
        %v1644 = vmul.f32 -0.5, %v1521
        %v1645 = vadd.f32 %v1644, 1.0
        %v1646 = vmul.f32 %v1645, %v1521
        %v1647 = vand.u32 2147483647, %v1521
        %vm1648 = vcmp.lt.f32.partialorder %v1647, 0.0004427343
        %v1649 = vsel %vm1648, %v1646, %v1643
        %v1650 = vadd.f32 %v1522, 1.0
        %v1651 = vlog2.pop %v1650
        %v1652 = vmul.f32 %v1651, 0.6931472
        %v1653 = vmul.f32 -0.5, %v1522
        %v1654 = vadd.f32 %v1653, 1.0
        %v1655 = vmul.f32 %v1654, %v1522
        %v1656 = vand.u32 2147483647, %v1522
        %vm1657 = vcmp.lt.f32.partialorder %v1656, 0.0004427343
        %v1658 = vsel %vm1657, %v1655, %v1652
        %v1659 = vadd.f32 %v1523, 1.0
        %v1660 = vlog2.pop %v1659
        %v1661 = vmul.f32 %v1660, 0.6931472
        %v1662 = vmul.f32 -0.5, %v1523
        %v1663 = vadd.f32 %v1662, 1.0
        %v1664 = vmul.f32 %v1663, %v1523
        %v1665 = vand.u32 2147483647, %v1523
        %vm1666 = vcmp.lt.f32.partialorder %v1665, 0.0004427343
        %v1667 = vsel %vm1666, %v1664, %v1661
        %v1668 = vadd.f32 %v1524, 1.0
        %v1669 = vlog2.pop %v1668
        %v1670 = vmul.f32 %v1669, 0.6931472
        %v1671 = vmul.f32 -0.5, %v1524
        %v1672 = vadd.f32 %v1671, 1.0
        %v1673 = vmul.f32 %v1672, %v1524
        %v1674 = vand.u32 2147483647, %v1524
        %vm1675 = vcmp.lt.f32.partialorder %v1674, 0.0004427343
        %v1676 = vsel %vm1675, %v1673, %v1670
        %v1677 = vadd.f32 %v1525, 1.0
        %v1678 = vlog2.pop %v1677
        %v1679 = vmul.f32 %v1678, 0.6931472
        %v1680 = vmul.f32 -0.5, %v1525
        %v1681 = vadd.f32 %v1680, 1.0
        %v1682 = vmul.f32 %v1681, %v1525
        %v1683 = vand.u32 2147483647, %v1525
        %vm1684 = vcmp.lt.f32.partialorder %v1683, 0.0004427343
        %v1685 = vsel %vm1684, %v1682, %v1679
        %v1686 = vadd.f32 %v1526, 1.0
        %v1687 = vlog2.pop %v1686
        %v1688 = vmul.f32 %v1687, 0.6931472
        %v1689 = vmul.f32 -0.5, %v1526
        %v1690 = vadd.f32 %v1689, 1.0
        %v1691 = vmul.f32 %v1690, %v1526
        %v1692 = vand.u32 2147483647, %v1526
        %vm1693 = vcmp.lt.f32.partialorder %v1692, 0.0004427343
        %v1694 = vsel %vm1693, %v1691, %v1688
        %v1695 = vadd.f32 %v1527, 1.0
        %v1696 = vlog2.pop %v1695
        %v1697 = vmul.f32 %v1696, 0.6931472
        %v1698 = vmul.f32 -0.5, %v1527
        %v1699 = vadd.f32 %v1698, 1.0
        %v1700 = vmul.f32 %v1699, %v1527
        %v1701 = vand.u32 2147483647, %v1527
        %vm1702 = vcmp.lt.f32.partialorder %v1701, 0.0004427343
        %v1703 = vsel %vm1702, %v1700, %v1697
        %v1704 = vadd.f32 %v1528, 1.0
        %v1705 = vlog2.pop %v1704
        %v1706 = vmul.f32 %v1705, 0.6931472
        %v1707 = vmul.f32 -0.5, %v1528
        %v1708 = vadd.f32 %v1707, 1.0
        %v1709 = vmul.f32 %v1708, %v1528
        %v1710 = vand.u32 2147483647, %v1528
        %vm1711 = vcmp.lt.f32.partialorder %v1710, 0.0004427343
        %v1712 = vsel %vm1711, %v1709, %v1706
        %v1713 = vadd.f32 %v1529, 1.0
        %v1714 = vlog2.pop %v1713
        %v1715 = vmul.f32 %v1714, 0.6931472
        %v1716 = vmul.f32 -0.5, %v1529
        %v1717 = vadd.f32 %v1716, 1.0
        %v1718 = vmul.f32 %v1717, %v1529
        %v1719 = vand.u32 2147483647, %v1529
        %vm1720 = vcmp.lt.f32.partialorder %v1719, 0.0004427343
        %v1721 = vsel %vm1720, %v1718, %v1715
        %v1722 = vadd.f32 %v1530, 1.0
        %v1723 = vlog2.pop %v1722
        %v1724 = vmul.f32 %v1723, 0.6931472
        %v1725 = vmul.f32 -0.5, %v1530
        %v1726 = vadd.f32 %v1725, 1.0
        %v1727 = vmul.f32 %v1726, %v1530
        %v1728 = vand.u32 2147483647, %v1530
        %vm1729 = vcmp.lt.f32.partialorder %v1728, 0.0004427343
        %v1730 = vsel %vm1729, %v1727, %v1724
        %v1731 = vadd.f32 %v1531, 1.0
        %v1732 = vlog2.pop %v1731
        %v1733 = vmul.f32 %v1732, 0.6931472
        %v1734 = vmul.f32 -0.5, %v1531
        %v1735 = vadd.f32 %v1734, 1.0
        %v1736 = vmul.f32 %v1735, %v1531
        %v1737 = vand.u32 2147483647, %v1531
        %vm1738 = vcmp.lt.f32.partialorder %v1737, 0.0004427343
        %v1739 = vsel %vm1738, %v1736, %v1733
        %v1740 = vadd.f32 %v1532, 1.0
        %v1741 = vlog2.pop %v1740
        %v1742 = vmul.f32 %v1741, 0.6931472
        %v1743 = vmul.f32 -0.5, %v1532
        %v1744 = vadd.f32 %v1743, 1.0
        %v1745 = vmul.f32 %v1744, %v1532
        %v1746 = vand.u32 2147483647, %v1532
        %vm1747 = vcmp.lt.f32.partialorder %v1746, 0.0004427343
        %v1748 = vsel %vm1747, %v1745, %v1742
        %v1749 = vadd.f32 %v1533, 1.0
        %v1750 = vlog2.pop %v1749
        %v1751 = vmul.f32 %v1750, 0.6931472
        %v1752 = vmul.f32 -0.5, %v1533
        %v1753 = vadd.f32 %v1752, 1.0
        %v1754 = vmul.f32 %v1753, %v1533
        %v1755 = vand.u32 2147483647, %v1533
        %vm1756 = vcmp.lt.f32.partialorder %v1755, 0.0004427343
        %v1757 = vsel %vm1756, %v1754, %v1751
        %v1758 = vadd.f32 %v1534, 1.0
        %v1759 = vlog2.pop %v1758
        %v1760 = vmul.f32 %v1759, 0.6931472
        %v1761 = vmul.f32 -0.5, %v1534
        %v1762 = vadd.f32 %v1761, 1.0
        %v1763 = vmul.f32 %v1762, %v1534
        %v1764 = vand.u32 2147483647, %v1534
        %vm1765 = vcmp.lt.f32.partialorder %v1764, 0.0004427343
        %v1766 = vsel %vm1765, %v1763, %v1760
        %v1767 = vadd.f32 %v1535, 1.0
        %v1768 = vlog2.pop %v1767
        %v1769 = vmul.f32 %v1768, 0.6931472
        %v1770 = vmul.f32 -0.5, %v1535
        %v1771 = vadd.f32 %v1770, 1.0
        %v1772 = vmul.f32 %v1771, %v1535
        %v1773 = vand.u32 2147483647, %v1535
        %vm1774 = vcmp.lt.f32.partialorder %v1773, 0.0004427343
        %v1775 = vsel %vm1774, %v1772, %v1769
        %v1776 = vadd.f32 %v1536, 1.0
        %v1777 = vlog2.pop %v1776
        %v1778 = vmul.f32 %v1777, 0.6931472
        %v1779 = vmul.f32 -0.5, %v1536
        %v1780 = vadd.f32 %v1779, 1.0
        %v1781 = vmul.f32 %v1780, %v1536
        %v1782 = vand.u32 2147483647, %v1536
        %vm1783 = vcmp.lt.f32.partialorder %v1782, 0.0004427343
        %v1784 = vsel %vm1783, %v1781, %v1778
        %v1785 = vadd.f32 %v1537, 1.0
        %v1786 = vlog2.pop %v1785
        %v1787 = vmul.f32 %v1786, 0.6931472
        %v1788 = vmul.f32 -0.5, %v1537
        %v1789 = vadd.f32 %v1788, 1.0
        %v1790 = vmul.f32 %v1789, %v1537
        %v1791 = vand.u32 2147483647, %v1537
        %vm1792 = vcmp.lt.f32.partialorder %v1791, 0.0004427343
        %v1793 = vsel %vm1792, %v1790, %v1787
        %v1794 = vadd.f32 %v1538, 1.0
        %v1795 = vlog2.pop %v1794
        %v1796 = vmul.f32 %v1795, 0.6931472
        %v1797 = vmul.f32 -0.5, %v1538
        %v1798 = vadd.f32 %v1797, 1.0
        %v1799 = vmul.f32 %v1798, %v1538
        %v1800 = vand.u32 2147483647, %v1538
        %vm1801 = vcmp.lt.f32.partialorder %v1800, 0.0004427343
        %v1802 = vsel %vm1801, %v1799, %v1796
        %v1803 = vadd.f32 %v1539, 1.0
        %v1804 = vlog2.pop %v1803
        %v1805 = vmul.f32 %v1804, 0.6931472
        %v1806 = vmul.f32 -0.5, %v1539
        %v1807 = vadd.f32 %v1806, 1.0
        %v1808 = vmul.f32 %v1807, %v1539
        %v1809 = vand.u32 2147483647, %v1539
        %vm1810 = vcmp.lt.f32.partialorder %v1809, 0.0004427343
        %v1811 = vsel %vm1810, %v1808, %v1805
        %v1812 = vadd.f32 %v1540, 1.0
        %v1813 = vlog2.pop %v1812
        %v1814 = vmul.f32 %v1813, 0.6931472
        %v1815 = vmul.f32 -0.5, %v1540
        %v1816 = vadd.f32 %v1815, 1.0
        %v1817 = vmul.f32 %v1816, %v1540
        %v1818 = vand.u32 2147483647, %v1540
        %vm1819 = vcmp.lt.f32.partialorder %v1818, 0.0004427343
        %v1820 = vsel %vm1819, %v1817, %v1814
        %v1821 = vadd.f32 %v1541, 1.0
        %v1822 = vlog2.pop %v1821
        %v1823 = vmul.f32 %v1822, 0.6931472
        %v1824 = vmul.f32 -0.5, %v1541
        %v1825 = vadd.f32 %v1824, 1.0
        %v1826 = vmul.f32 %v1825, %v1541
        %v1827 = vand.u32 2147483647, %v1541
        %vm1828 = vcmp.lt.f32.partialorder %v1827, 0.0004427343
        %v1829 = vsel %vm1828, %v1826, %v1823
        %v1830 = vsub.f32 %v1550, %v1038
        %v1831 = vsub.f32 %v1559, %v1047
        %v1832 = vsub.f32 %v1568, %v1056
        %v1833 = vsub.f32 %v1577, %v1065
        %v1834 = vsub.f32 %v1586, %v1074
        %v1835 = vsub.f32 %v1595, %v1083
        %v1836 = vsub.f32 %v1604, %v1092
        %v1837 = vsub.f32 %v1613, %v1101
        %v1838 = vsub.f32 %v1622, %v1110
        %v1839 = vsub.f32 %v1631, %v1119
        %v1840 = vsub.f32 %v1640, %v1128
        %v1841 = vsub.f32 %v1649, %v1137
        %v1842 = vsub.f32 %v1658, %v1146
        %v1843 = vsub.f32 %v1667, %v1155
        %v1844 = vsub.f32 %v1676, %v1164
        %v1845 = vsub.f32 %v1685, %v1173
        %v1846 = vsub.f32 %v1694, %v1182
        %v1847 = vsub.f32 %v1703, %v1191
        %v1848 = vsub.f32 %v1712, %v1200
        %v1849 = vsub.f32 %v1721, %v1209
        %v1850 = vsub.f32 %v1730, %v1218
        %v1851 = vsub.f32 %v1739, %v1227
        %v1852 = vsub.f32 %v1748, %v1236
        %v1853 = vsub.f32 %v1757, %v1245
        %v1854 = vsub.f32 %v1766, %v1254
        %v1855 = vsub.f32 %v1775, %v1263
        %v1856 = vsub.f32 %v1784, %v1272
        %v1857 = vsub.f32 %v1793, %v1281
        %v1858 = vsub.f32 %v1802, %v1290
        %v1859 = vsub.f32 %v1811, %v1299
        %v1860 = vsub.f32 %v1820, %v1308
        %v1861 = vsub.f32 %v1829, %v1317
        %v1862 = vld [vmem:[%s356] sm:$0xff]
        %v1863 = vld [vmem:[%s356 + $0x8] sm:$0xff]
        %v1864 = vld [vmem:[%s356 + $0x10] sm:$0xff]
        %v1865 = vld [vmem:[%s356 + $0x18] sm:$0xff]
        %v1866 = vld [vmem:[%s356 + $0x20] sm:$0xff]
        %v1867 = vld [vmem:[%s356 + $0x28] sm:$0xff]
        %v1868 = vld [vmem:[%s356 + $0x30] sm:$0xff]
        %v1869 = vld [vmem:[%s356 + $0x38] sm:$0xff]
        %v1870 = vld [vmem:[%s356 + $0x40] sm:$0xff]
        %v1871 = vld [vmem:[%s356 + $0x48] sm:$0xff]
        %v1872 = vld [vmem:[%s356 + $0x50] sm:$0xff]
        %v1873 = vld [vmem:[%s356 + $0x58] sm:$0xff]
        %v1874 = vld [vmem:[%s356 + $0x60] sm:$0xff]
        %v1875 = vld [vmem:[%s356 + $0x68] sm:$0xff]
        %v1876 = vld [vmem:[%s356 + $0x70] sm:$0xff]
        %v1877 = vld [vmem:[%s356 + $0x78] sm:$0xff]
        %v1878 = vld [vmem:[%s356 + $0x80] sm:$0xff]
        %v1879 = vld [vmem:[%s356 + $0x88] sm:$0xff]
        %v1880 = vld [vmem:[%s356 + $0x90] sm:$0xff]
        %v1881 = vld [vmem:[%s356 + $0x98] sm:$0xff]
        %v1882 = vld [vmem:[%s356 + $0xa0] sm:$0xff]
        %v1883 = vld [vmem:[%s356 + $0xa8] sm:$0xff]
        %v1884 = vld [vmem:[%s356 + $0xb0] sm:$0xff]
        %v1885 = vld [vmem:[%s356 + $0xb8] sm:$0xff]
        %v1886 = vld [vmem:[%s356 + $0xc0] sm:$0xff]
        %v1887 = vld [vmem:[%s356 + $0xc8] sm:$0xff]
        %v1888 = vld [vmem:[%s356 + $0xd0] sm:$0xff]
        %v1889 = vld [vmem:[%s356 + $0xd8] sm:$0xff]
        %v1890 = vld [vmem:[%s356 + $0xe0] sm:$0xff]
        %v1891 = vld [vmem:[%s356 + $0xe8] sm:$0xff]
        %v1892 = vld [vmem:[%s356 + $0xf0] sm:$0xff]
        %v1893 = vld [vmem:[%s356 + $0xf8] sm:$0xff]
        %v1894 = vmul.f32 %v1350, %v1862
        %v1895 = vmul.f32 %v1351, %v1863
        %v1896 = vmul.f32 %v1352, %v1864
        %v1897 = vmul.f32 %v1353, %v1865
        %v1898 = vmul.f32 %v1354, %v1866
        %v1899 = vmul.f32 %v1355, %v1867
        %v1900 = vmul.f32 %v1356, %v1868
        %v1901 = vmul.f32 %v1357, %v1869
        %v1902 = vmul.f32 %v1358, %v1870
        %v1903 = vmul.f32 %v1359, %v1871
        %v1904 = vmul.f32 %v1360, %v1872
        %v1905 = vmul.f32 %v1361, %v1873
        %v1906 = vmul.f32 %v1362, %v1874
        %v1907 = vmul.f32 %v1363, %v1875
        %v1908 = vmul.f32 %v1364, %v1876
        %v1909 = vmul.f32 %v1365, %v1877
        %v1910 = vmul.f32 %v1366, %v1878
        %v1911 = vmul.f32 %v1367, %v1879
        %v1912 = vmul.f32 %v1368, %v1880
        %v1913 = vmul.f32 %v1369, %v1881
        %v1914 = vmul.f32 %v1370, %v1882
        %v1915 = vmul.f32 %v1371, %v1883
        %v1916 = vmul.f32 %v1372, %v1884
        %v1917 = vmul.f32 %v1373, %v1885
        %v1918 = vmul.f32 %v1374, %v1886
        %v1919 = vmul.f32 %v1375, %v1887
        %v1920 = vmul.f32 %v1376, %v1888
        %v1921 = vmul.f32 %v1377, %v1889
        %v1922 = vmul.f32 %v1378, %v1890
        %v1923 = vmul.f32 %v1379, %v1891
        %v1924 = vmul.f32 %v1380, %v1892
        %v1925 = vmul.f32 %v1381, %v1893
        %v1926 = vsub.f32 %v1830, %v1894
        %v1927 = vsub.f32 %v1831, %v1895
        %v1928 = vsub.f32 %v1832, %v1896
        %v1929 = vsub.f32 %v1833, %v1897
        %v1930 = vsub.f32 %v1834, %v1898
        %v1931 = vsub.f32 %v1835, %v1899
        %v1932 = vsub.f32 %v1836, %v1900
        %v1933 = vsub.f32 %v1837, %v1901
        %v1934 = vsub.f32 %v1838, %v1902
        %v1935 = vsub.f32 %v1839, %v1903
        %v1936 = vsub.f32 %v1840, %v1904
        %v1937 = vsub.f32 %v1841, %v1905
        %v1938 = vsub.f32 %v1842, %v1906
        %v1939 = vsub.f32 %v1843, %v1907
        %v1940 = vsub.f32 %v1844, %v1908
        %v1941 = vsub.f32 %v1845, %v1909
        %v1942 = vsub.f32 %v1846, %v1910
        %v1943 = vsub.f32 %v1847, %v1911
        %v1944 = vsub.f32 %v1848, %v1912
        %v1945 = vsub.f32 %v1849, %v1913
        %v1946 = vsub.f32 %v1850, %v1914
        %v1947 = vsub.f32 %v1851, %v1915
        %v1948 = vsub.f32 %v1852, %v1916
        %v1949 = vsub.f32 %v1853, %v1917
        %v1950 = vsub.f32 %v1854, %v1918
        %v1951 = vsub.f32 %v1855, %v1919
        %v1952 = vsub.f32 %v1856, %v1920
        %v1953 = vsub.f32 %v1857, %v1921
        %v1954 = vsub.f32 %v1858, %v1922
        %v1955 = vsub.f32 %v1859, %v1923
        %v1956 = vsub.f32 %v1860, %v1924
        %v1957 = vsub.f32 %v1861, %v1925
        %v1958 = vadd.f32 %v1926, 0.0
        %v1959 = vadd.f32 %v1942, 0.0
        %v1960 = vadd.f32 %v1958, %v1927
        %v1961 = vadd.f32 %v1959, %v1943
        %v1962 = vadd.f32 %v1960, %v1928
        %v1963 = vadd.f32 %v1961, %v1944
        %v1964 = vadd.f32 %v1962, %v1929
        %v1965 = vadd.f32 %v1963, %v1945
        %v1966 = vadd.f32 %v1964, %v1930
        %v1967 = vadd.f32 %v1965, %v1946
        %v1968 = vadd.f32 %v1966, %v1931
        %v1969 = vadd.f32 %v1967, %v1947
        %v1970 = vadd.f32 %v1968, %v1932
        %v1971 = vadd.f32 %v1969, %v1948
        %v1972 = vadd.f32 %v1970, %v1933
        %v1973 = vadd.f32 %v1971, %v1949
        %v1974 = vadd.f32 %v1972, %v1934
        %v1975 = vadd.f32 %v1973, %v1950
        %v1976 = vadd.f32 %v1974, %v1935
        %v1977 = vadd.f32 %v1975, %v1951
        %v1978 = vadd.f32 %v1976, %v1936
        %v1979 = vadd.f32 %v1977, %v1952
        %v1980 = vadd.f32 %v1978, %v1937
        %v1981 = vadd.f32 %v1979, %v1953
        %v1982 = vadd.f32 %v1980, %v1938
        %v1983 = vadd.f32 %v1981, %v1954
        %v1984 = vadd.f32 %v1982, %v1939
        %v1985 = vadd.f32 %v1983, %v1955
        %v1986 = vadd.f32 %v1984, %v1940
        %v1987 = vadd.f32 %v1985, %v1956
        %v1988 = vadd.f32 %v1986, %v1941
        %v1989 = vadd.f32 %v1987, %v1957
        %1990 = vst [vmem:[%s397] sm:$0xff] %v1988
        %1991 = vst [vmem:[%s397 + $0x8] sm:$0xff] %v1989
        %s1992 = sand.u32 %s174, 1
        %s1993 = scalar_lea.sflag [#allocation4], %s1992
        %s1994 = sand.u32 %s174, 1
        %s1995 = smul.addr %s1994, 128
        %s1996 = scalar_lea.vmem [#allocation11], %s1995
        %s1997 = sand.u32 %s200, 1
        %s1998 = scalar_lea.sflag [#allocation13], %s1997
        %s1999 = sand.u32 %s200, 1
        %s2000 = smul.addr %s1999, 16
        %s2001 = scalar_lea.vmem [#allocation12], %s2000
        // Predicated region
        $region65: #{tpu_custom_call.1} parent=43 // pred_check
          %p2002 = pneg %p184
        $region66: #{tpu_custom_call.1} parent=43 // pred_check_branch
          %2004 = sbr.rel (%p2002) target = $region68
        $region67: #{tpu_custom_call.1} parent=43 // pred_region
          %s2005 = smul.u32 2, %s30
          %2007 = vsyncadd %s1993, 0
          %s2008 = smul.addr %s2005, 16
          %s2009 = smul.addr %s2008, 4
          %s2010 = scalar_lea.hbm %s6, %s2009
          %s2011 = sshll.u32 %s1996, 4
          %s2012 = int_to_ptr.vmem [resolvable:$true] %s2011
          %s2013 = sshll.u32 %s2010, 4
          %s2014 = int_to_ptr.hbm [resolvable:$true] %s2013
          %2019 = dma.vmem_to_hbm [thread:$0]  %s2012, 2048, %s2014, %s1993, 1024, 1024, 64
        $region68: #{tpu_custom_call.1} parent=43 // pred_fallthru
          _
        // Predicated region
        $region69: #{tpu_custom_call.1} parent=43 // pred_check
          %p2020 = pneg %p210
        $region70: #{tpu_custom_call.1} parent=43 // pred_check_branch
          %2022 = sbr.rel (%p2020) target = $region72
        $region71: #{tpu_custom_call.1} parent=43 // pred_region
          %s2023 = smul.u32 2, %s30
          %2025 = vsyncadd %s1998, 0
          %s2026 = smul.addr %s2023, 8
          %s2027 = scalar_lea.hbm %s7, %s2026
          %s2028 = sshll.u32 %s2001, 4
          %s2029 = int_to_ptr.vmem [resolvable:$true] %s2028
          %s2030 = sshll.u32 %s2027, 4
          %s2031 = int_to_ptr.hbm [resolvable:$true] %s2030
          %2036 = dma.vmem_to_hbm [thread:$0]  %s2029, 256, %s2031, %s1998, 128, 128, 8
        $region72: #{tpu_custom_call.1} parent=43 // pred_fallthru
          _
      $region44: #{tpu_custom_call.1} parent=5 // pred_fallthru
        _
      %p2037 = scmp.le.s32.totalorder 2, %s25
      // Predicated region
      $region73: #{tpu_custom_call.1} parent=5 // pred_check
        %p2038 = pneg %p2037
      $region74: #{tpu_custom_call.1} parent=5 // pred_check_branch
        %2040 = sbr.rel (%p2038) target = $region76
      $region75: #{tpu_custom_call.1} parent=5 // pred_region
        %s2041 = ssub.s32 %s25, 2
        // Predicated region
        $region77: #{tpu_custom_call.1} parent=75 // pred_check
          %p2042 = pneg %p190
        $region78: #{tpu_custom_call.1} parent=75 // pred_check_branch
          %2044 = sbr.rel (%p2042) target = $region80
        $region79: #{tpu_custom_call.1} parent=75 // pred_region
          %s2045 = sand.u32 %s175, 1
          %s2046 = scalar_lea.sflag [#allocation4], %s2045
          %s2047 = sand.u32 %s175, 1
          %s2048 = smul.addr %s2047, 128
          %s2049 = scalar_lea.vmem [#allocation11], %s2048
          %2051 = dma.done %s2046, 2048
        $region80: #{tpu_custom_call.1} parent=75 // pred_fallthru
          _
        // Predicated region
        $region81: #{tpu_custom_call.1} parent=75 // pred_check
          %p2052 = pneg %p216
        $region82: #{tpu_custom_call.1} parent=75 // pred_check_branch
          %2054 = sbr.rel (%p2052) target = $region84
        $region83: #{tpu_custom_call.1} parent=75 // pred_region
          %s2055 = sand.u32 %s201, 1
          %s2056 = scalar_lea.sflag [#allocation13], %s2055
          %s2057 = sand.u32 %s201, 1
          %s2058 = smul.addr %s2057, 16
          %s2059 = scalar_lea.vmem [#allocation12], %s2058
          %2061 = dma.done %s2056, 256
        $region84: #{tpu_custom_call.1} parent=75 // pred_fallthru
          _
      $region76: #{tpu_custom_call.1} parent=5 // pred_fallthru
        _
    $region6: #{tpu_custom_call.1} parent=1 // loop_footer
      %s29 = sadd.s32 1, %s25
    $region7: #{tpu_custom_call.1} parent=1 // loop_footer_branch
      %24 = sbr.rel target = $region3
    $region8: #{tpu_custom_call.1} parent=1 // loop_exit
      _
    %2062 = vsyncpa [#allocation3], 1
    %s2063 = scalar_lea.sflag [#allocation3], 1
    %2064 = vsyncpa %s2063, 1
    %2065 = vsyncpa [#allocation6], 1
    %2066 = vsyncpa [#allocation9], 1
    %2067 = vsyncpa [#allocation4], 1
    %s2068 = scalar_lea.sflag [#allocation4], 1
    %2069 = vsyncpa %s2068, 1
    %2070 = vsyncpa [#allocation13], 1
    %s2071 = scalar_lea.sflag [#allocation13], 1
    %2072 = vsyncpa %s2071, 1

</llo_original>
